<compile_context>
chip_gen: v5e
topology: v5e:2x2
jax: 0.10.0
libtpu: 0.0.40
codegen_flags: <defaults>
</compile_context>

<pallas_src>
import numpy as np

import jax
import jax.numpy as jnp
from jax.experimental import pallas as pl
from jax.experimental.pallas import tpu as pltpu


# --------------------------------------------------------------------------
# Host-side constant operators (depend only on static shapes).
# --------------------------------------------------------------------------
def _build_fft_operators(H, W, C, NB):
    """DFT operators for a batch-major (NB*H, W*C) lane-dense slab.

    hdft : (4*NB*H, NB*H) packed [fhc; fhs; ihc; ihs], each kron(I_NB, .)
                          fhc/fhs: forward FFT along H (left multiply)
                          ihc/ihs: inverse FFT along H incl. 1/H
    kwf  : (2*W*C, 2*Wf*C) fused forward rFFT along W + complex combine:
                          [yre|yim] = [hre|him] @ kwf
    kwia : (2*Wf*C, W*C)  [yre|yim] @ kwia = yre@kwa + yim@kwb
    kwib : (2*Wf*C, W*C)  [yre|yim] @ kwib = yre@kwb - yim@kwa
                          (kwa/kwb = inverse real FFT along W incl. 1/W and
                           Hermitian doubling weights)
    """
    assert W % 2 == 0
    Wf = W // 2 + 1

    kh = np.arange(H)
    ah = 2.0 * np.pi * np.outer(kh, kh) / H
    eye_b = np.eye(NB)
    hdft = np.concatenate([
        np.kron(eye_b, np.cos(ah)),          # fhc
        np.kron(eye_b, -np.sin(ah)),         # fhs
        np.kron(eye_b, np.cos(ah) / H),      # ihc
        np.kron(eye_b, np.sin(ah) / H),      # ihs
    ], axis=0)

    w = np.arange(W)
    kw = np.arange(Wf)
    eye_c = np.eye(C)
    aw = 2.0 * np.pi * np.outer(w, kw) / W            # (W, Wf)
    kwc = np.kron(np.cos(aw), eye_c)                  # (W*C, Wf*C)
    kws = np.kron(-np.sin(aw), eye_c)
    kwf = np.block([[kwc, kws], [-kws, kwc]])         # (2*W*C, 2*Wf*C)

    ai = 2.0 * np.pi * np.outer(kw, w) / W            # (Wf, W)
    mr = np.full((Wf, 1), 2.0); mr[0, 0] = 1.0; mr[-1, 0] = 1.0
    mi = np.full((Wf, 1), 2.0); mi[0, 0] = 0.0; mi[-1, 0] = 0.0
    kwa = np.kron(mr * np.cos(ai) / W, eye_c)         # (Wf*C, W*C)
    kwb = np.kron(-mi * np.sin(ai) / W, eye_c)
    kwia = np.concatenate([kwa, kwb], axis=0)         # (2*Wf*C, W*C)
    kwib = np.concatenate([kwb, -kwa], axis=0)

    f32 = lambda a: jnp.asarray(a, jnp.float32)
    return f32(hdft), f32(kwf), f32(kwia), f32(kwib)


def _build_quadrant_mats(W, C):
    """Lane-dense 0/1 selection matmuls for the LFU quadrant->channel shuffle.

    xs = top_half(x1) @ gtop + bottom_half(x1) @ gbot, output channel blocks
    ordered [TL, BL, TR, BR] of the first C//4 channels.
    """
    Cq = C // 4
    Wh = W // 2
    gtop = np.zeros((W * C, Wh * C), np.float32)
    gbot = np.zeros((W * C, Wh * C), np.float32)
    for wp in range(Wh):
        for cp in range(C):
            j = wp * C + cp
            blk = cp // Cq                 # 0=TL, 1=BL, 2=TR, 3=BR
            c_src = cp % Cq
            w_src = wp if blk in (0, 1) else wp + Wh
            i = w_src * C + c_src
            if blk in (0, 2):
                gtop[i, j] = 1.0
            else:
                gbot[i, j] = 1.0
    return jnp.asarray(gtop), jnp.asarray(gbot)


# --------------------------------------------------------------------------
# Fused SpectralTransform kernel (one batch block per grid step).
# --------------------------------------------------------------------------
def _spectral_transform_kernel(
        x_ref,
        kconv1_ref, bnb_ref, kpre0_ref,
        hdft1_ref, kwf1_ref, kwia1_ref, kwib1_ref,
        gtop_ref, gbot_ref,
        kpre0l_ref, hdft2_ref, kwf2_ref, kwia2_ref, kwib2_ref,
        kconv2_ref,
        o_ref):
    f32 = jnp.float32

    def mm(a, b):
        return jnp.dot(a, b, preferred_element_type=f32)

    def fourier_unit(y, hdft_ref, kwf_ref, kwia_ref, kwib_ref):
        # y: (m, w*c) real, already includes the module's `+ 1e-8`.
        m = y.shape[0]
        fhc = hdft_ref[0 * m:1 * m, :]
        fhs = hdft_ref[1 * m:2 * m, :]
        ihc = hdft_ref[2 * m:3 * m, :]
        ihs = hdft_ref[3 * m:4 * m, :]
        # Forward FFT along H (two small left matmuls), then the fused
        # forward-rFFT-along-W + complex combine as one K = 2*w*c matmul.
        hri = jnp.concatenate([mm(fhc, y), mm(fhs, y)], axis=1)
        yri = mm(hri, kwf_ref[...])                        # [yre | yim]
        # abs/angle -> cos/sin round-trip is the identity on (re, im); the
        # module then adds 1e-8 (re), 1e-8 (im) and another 1e-8 (re).
        nf = kwf_ref.shape[1] // 2
        lane = jax.lax.broadcasted_iota(jnp.int32, yri.shape, 1)
        yri = yri + jnp.where(lane < nf, f32(2e-8), f32(1e-8))
        # Inverse: W-inverse first (fused over re/im in K), H-inverse last.
        p_ = mm(yri, kwia_ref[...])                        # yre@kwa + yim@kwb
        q_ = mm(yri, kwib_ref[...])                        # yre@kwb - yim@kwa
        return jnp.abs(mm(ihc, p_) + mm(ihs, q_))

    nb, h, wcin = x_ref.shape
    x = x_ref[...].reshape(nb * h, wcin)                   # (nb*h, W*Cin)

    # conv1 (1x1, BN scale folded into weights) + BN bias + ReLU
    x1 = jnp.maximum(mm(x, kconv1_ref[...]) + bnb_ref[...], 0.0)
    wc = x1.shape[1]                                       # W*Cmid

    # global FourierUnit
    y = mm(x1, kpre0_ref[...]) + 1e-8
    fu = fourier_unit(y, hdft1_ref, kwf1_ref, kwia1_ref, kwib1_ref)

    # LFU: quadrants of the first Cmid//4 channels -> channels (lane-dense
    # selection matmuls), FourierUnit at (H/2, W/2), then 2x2 spatial tiling.
    h2 = h // 2
    x13 = x1.reshape(nb, h, wc)
    top = x13[:, :h2, :].reshape(nb * h2, wc)
    bot = x13[:, h2:, :].reshape(nb * h2, wc)
    xs = mm(top, gtop_ref[...]) + mm(bot, gbot_ref[...])   # (nb*h2, W2*Cmid)
    ys = mm(xs, kpre0l_ref[...]) + 1e-8
    lf = fourier_unit(ys, hdft2_ref, kwf2_ref, kwia2_ref, kwib2_ref)
    lf = jnp.concatenate([lf, lf], axis=1)                 # tile 2x along W
    lf3 = lf.reshape(nb, h2, wc)
    lf = jnp.concatenate([lf3, lf3], axis=1).reshape(nb * h, wc)  # 2x along H

    # conv2 (1x1) on x1 + fu + lf; lane-dense (nb*h, W*Cout) result.
    out = mm(x1 + fu + lf, kconv2_ref[...])
    o_ref[...] = out.reshape(nb, h, out.shape[1]).astype(o_ref.dtype)


def spectral_transform_forward(x_nhwc, p, *, batch_block=None):
    """x_nhwc: (N, H, W, Cin) f32 -> (N, H, W, Cout)."""
    N, H, W, Cin = x_nhwc.shape
    Cmid = p["w_conv1"].shape[1]
    Cout = p["w_conv2"].shape[1]
    assert Cmid % 4 == 0 and H % 2 == 0 and W % 2 == 0
    NB = N if batch_block is None else batch_block
    assert N % NB == 0
    H2, W2 = H // 2, W // 2
    f32 = jnp.float32

    # 1x1 convs as (I_W ⊗ Wc) operators in the (rows, W*C) layout (the right
    # choice at small C: keeps lanes dense; see TODO for large C).
    eye_w = jnp.eye(W, dtype=f32)
    eye_w2 = jnp.eye(W2, dtype=f32)

    # Inference-mode BatchNorm: scale folded into conv1 columns, bias kept.
    scale = p["bn_gamma"] / jnp.sqrt(p["bn_var"] + 1e-5)
    bias = p["bn_beta"] - p["bn_mean"] * scale
    kconv1 = jnp.kron(eye_w, (p["w_conv1"] * scale[None, :]).astype(f32))
    bnb = jnp.tile(bias, W).reshape(1, W * Cmid).astype(f32)

    kpre0 = jnp.kron(eye_w, p["w_pre0"].astype(f32))        # (W*Cmid, W*Cmid)
    kpre0l = jnp.kron(eye_w2, p["w_pre0_lfu"].astype(f32))  # (W2*Cmid, W2*Cmid)
    kconv2 = jnp.kron(eye_w, p["w_conv2"].astype(f32))      # (W*Cmid, W*Cout)

    hdft1, kwf1, kwia1, kwib1 = _build_fft_operators(H, W, Cmid, NB)
    hdft2, kwf2, kwia2, kwib2 = _build_fft_operators(H2, W2, Cmid, NB)
    gtop, gbot = _build_quadrant_mats(W, Cmid)

    x3d = x_nhwc.reshape(N, H, W * Cin).astype(f32)

    weights = [kconv1, bnb, kpre0,
               hdft1, kwf1, kwia1, kwib1,
               gtop, gbot,
               kpre0l, hdft2, kwf2, kwia2, kwib2,
               kconv2]
    in_specs = [pl.BlockSpec((NB, H, W * Cin), lambda n: (n, 0, 0))]
    # Constant index_map: each weight block is DMA'd once, not once per step.
    in_specs += [pl.BlockSpec(wt.shape, lambda n: (0, 0)) for wt in weights]

    out3d = pl.pallas_call(
        _spectral_transform_kernel,
        out_shape=jax.ShapeDtypeStruct((N, H, W * Cout), f32),
        grid=(N // NB,),
        in_specs=in_specs,
        out_specs=pl.BlockSpec((NB, H, W * Cout), lambda n: (n, 0, 0)),
        compiler_params=pltpu.CompilerParams(
            # Batch-block axis is independent across steps.
            dimension_semantics=("parallel",),
            vmem_limit_bytes=32 * 1024 * 1024),
    )(x3d, *weights)
    return out3d.reshape(N, H, W, Cout)


# --------------------------------------------------------------------------
# Pure-JAX reference (mirrors the PyTorch forward, NCHW, jnp.fft).
# --------------------------------------------------------------------------
def _fourier_unit_ref(x, w_pre0):
    y = jnp.einsum("nchw,cd->ndhw", x, w_pre0) + 1e-8
    xf = jnp.fft.rfft2(y, norm="backward")
    amp = jnp.abs(xf)
    pha = jnp.angle(xf)
    real = amp * jnp.cos(pha) + 1e-8
    imag = amp * jnp.sin(pha) + 1e-8
    out = (real + 1e-8) + 1j * imag
    z = jnp.fft.irfft2(out, s=(y.shape[-2], y.shape[-1]), norm="backward")
    return jnp.abs(z)


def spectral_transform_ref(x_nchw, p):
    x1 = jnp.einsum("nchw,cd->ndhw", x_nchw, p["w_conv1"])
    scale = p["bn_gamma"] / jnp.sqrt(p["bn_var"] + 1e-5)
    bias = p["bn_beta"] - p["bn_mean"] * scale
    x1 = jnp.maximum(x1 * scale[None, :, None, None]
                     + bias[None, :, None, None], 0.0)

    out = _fourier_unit_ref(x1, p["w_pre0"])

    n, c, h, w = x1.shape
    cq = c // 4
    xs = x1[:, :cq]
    xs = jnp.concatenate([xs[:, :, :h // 2], xs[:, :, h // 2:]], axis=1)
    xs = jnp.concatenate([xs[:, :, :, :w // 2], xs[:, :, :, w // 2:]], axis=1)
    xs = _fourier_unit_ref(xs, p["w_pre0_lfu"])
    xs = jnp.tile(xs, (1, 1, 2, 2))

    y = x1 + out + xs
    return jnp.einsum("nchw,cd->ndhw", y, p["w_conv2"])


def make_params(key, in_channels, out_channels):
    cmid = out_channels // 2
    ks = jax.random.split(key, 8)
    f = jnp.float32

    def w(k, shape, s=0.2):
        return jax.random.normal(k, shape, f) * s

    return {
        "w_conv1":    w(ks[0], (in_channels, cmid)),
        "bn_gamma":   1.0 + 0.1 * jax.random.normal(ks[1], (cmid,), f),
        "bn_beta":    0.1 * jax.random.normal(ks[2], (cmid,), f),
        "bn_mean":    0.1 * jax.random.normal(ks[3], (cmid,), f),
        "bn_var":     jax.random.uniform(ks[4], (cmid,), f, 0.5, 1.5),
        "w_pre0":     w(ks[5], (cmid, cmid)),
        "w_pre0_lfu": w(ks[6], (cmid, cmid)),
        "w_conv2":    w(ks[7], (cmid, out_channels)),
    }


if __name__ == "__main__":
    N, Cin, H, W = 2, 8, 16, 16
    Cout = 16                      # out_channels; Cmid = 8 (divisible by 4)

    key = jax.random.PRNGKey(0)
    kx, kp = jax.random.split(key)
    x_nchw = jax.random.normal(kx, (N, Cin, H, W), jnp.float32)   # PyTorch layout
    params = make_params(kp, Cin, Cout)

    x_nhwc = jnp.transpose(x_nchw, (0, 2, 3, 1))
    out_nhwc = jax.jit(spectral_transform_forward)(x_nhwc, params)
    out_nhwc = jax.block_until_ready(out_nhwc)
    out_nchw = jnp.transpose(out_nhwc, (0, 3, 1, 2))

    ref_nchw = spectral_transform_ref(x_nchw, params)
    assert out_nchw.shape == (N, Cout, H, W)
    err = float(jnp.max(jnp.abs(out_nchw - ref_nchw)))
    assert jnp.allclose(out_nchw, ref_nchw, atol=5e-3, rtol=5e-3), err

    print("KERNEL_OK")
</pallas_src>

<mosaic_0001>
module attributes {stable_mosaic.version = 11 : i64} {
  func.func @_spectral_transform_kernel(%arg0: i32, %arg1: memref<2x16x128xf32, #tpu.memory_space<vmem>>, %arg2: memref<128x128xf32, #tpu.memory_space<vmem>>, %arg3: memref<1x128xf32, #tpu.memory_space<vmem>>, %arg4: memref<128x128xf32, #tpu.memory_space<vmem>>, %arg5: memref<128x32xf32, #tpu.memory_space<vmem>>, %arg6: memref<256x144xf32, #tpu.memory_space<vmem>>, %arg7: memref<144x128xf32, #tpu.memory_space<vmem>>, %arg8: memref<144x128xf32, #tpu.memory_space<vmem>>, %arg9: memref<128x64xf32, #tpu.memory_space<vmem>>, %arg10: memref<128x64xf32, #tpu.memory_space<vmem>>, %arg11: memref<64x64xf32, #tpu.memory_space<vmem>>, %arg12: memref<64x16xf32, #tpu.memory_space<vmem>>, %arg13: memref<128x80xf32, #tpu.memory_space<vmem>>, %arg14: memref<80x64xf32, #tpu.memory_space<vmem>>, %arg15: memref<80x64xf32, #tpu.memory_space<vmem>>, %arg16: memref<128x256xf32, #tpu.memory_space<vmem>>, %arg17: memref<2x16x256xf32, #tpu.memory_space<vmem>>) attributes {dimension_semantics = [#tpu.dimension_semantics<parallel>], iteration_bounds = array<i64: 1>, scalar_prefetch = 0 : i64, scratch_operands = 0 : i64, tpu.core_type = #tpu.core_type<tc>, window_params = [{transform_indices = @transform_0, window_bounds = array<i64: 2, 16, 128>}, {pipeline_mode = #tpu.pipeline_mode<synchronous>, transform_indices = @transform_1, window_bounds = array<i64: 128, 128>}, {pipeline_mode = #tpu.pipeline_mode<synchronous>, transform_indices = @transform_2, window_bounds = array<i64: 1, 128>}, {pipeline_mode = #tpu.pipeline_mode<synchronous>, transform_indices = @transform_3, window_bounds = array<i64: 128, 128>}, {pipeline_mode = #tpu.pipeline_mode<synchronous>, transform_indices = @transform_4, window_bounds = array<i64: 128, 32>}, {pipeline_mode = #tpu.pipeline_mode<synchronous>, transform_indices = @transform_5, window_bounds = array<i64: 256, 144>}, {pipeline_mode = #tpu.pipeline_mode<synchronous>, transform_indices = @transform_6, window_bounds = array<i64: 144, 128>}, {pipeline_mode = #tpu.pipeline_mode<synchronous>, transform_indices = @transform_7, window_bounds = array<i64: 144, 128>}, {pipeline_mode = #tpu.pipeline_mode<synchronous>, transform_indices = @transform_8, window_bounds = array<i64: 128, 64>}, {pipeline_mode = #tpu.pipeline_mode<synchronous>, transform_indices = @transform_9, window_bounds = array<i64: 128, 64>}, {pipeline_mode = #tpu.pipeline_mode<synchronous>, transform_indices = @transform_10, window_bounds = array<i64: 64, 64>}, {pipeline_mode = #tpu.pipeline_mode<synchronous>, transform_indices = @transform_11, window_bounds = array<i64: 64, 16>}, {pipeline_mode = #tpu.pipeline_mode<synchronous>, transform_indices = @transform_12, window_bounds = array<i64: 128, 80>}, {pipeline_mode = #tpu.pipeline_mode<synchronous>, transform_indices = @transform_13, window_bounds = array<i64: 80, 64>}, {pipeline_mode = #tpu.pipeline_mode<synchronous>, transform_indices = @transform_14, window_bounds = array<i64: 80, 64>}, {pipeline_mode = #tpu.pipeline_mode<synchronous>, transform_indices = @transform_15, window_bounds = array<i64: 128, 256>}, {transform_indices = @transform_16, window_bounds = array<i64: 2, 16, 256>}]} {
    %c0 = arith.constant 0 : index
    %c0_0 = arith.constant 0 : index
    %c0_1 = arith.constant 0 : index
    %0 = vector.load %arg1[%c0, %c0_0, %c0_1] : memref<2x16x128xf32, #tpu.memory_space<vmem>>, vector<2x16x128xf32>
    %1 = vector.shape_cast %0 : vector<2x16x128xf32> to vector<32x128xf32>
    %c0_2 = arith.constant 0 : index
    %c0_3 = arith.constant 0 : index
    %2 = vector.load %arg2[%c0_2, %c0_3] : memref<128x128xf32, #tpu.memory_space<vmem>>, vector<128x128xf32>
    %cst = arith.constant dense<0.000000e+00> : vector<32x128xf32>
    %3 = tpu.matmul %1, %2, %cst {dimension_numbers = #tpu.dot_dimension_numbers<[1], [0], [0], [1], [0, 0, 1, 1], [], []>} : vector<32x128xf32>, vector<128x128xf32>, vector<32x128xf32> -> vector<32x128xf32>
    %c0_4 = arith.constant 0 : index
    %c0_5 = arith.constant 0 : index
    %4 = vector.load %arg3[%c0_4, %c0_5] : memref<1x128xf32, #tpu.memory_space<vmem>>, vector<1x128xf32>
    %5 = vector.broadcast %4 : vector<1x128xf32> to vector<32x128xf32>
    %6 = arith.addf %3, %5 : vector<32x128xf32>
    %cst_6 = arith.constant 0.000000e+00 : f32
    %7 = vector.broadcast %cst_6 : f32 to vector<32x128xf32>
    %8 = arith.maximumf %6, %7 : vector<32x128xf32>
    %c0_7 = arith.constant 0 : index
    %c0_8 = arith.constant 0 : index
    %9 = vector.load %arg4[%c0_7, %c0_8] : memref<128x128xf32, #tpu.memory_space<vmem>>, vector<128x128xf32>
    %cst_9 = arith.constant dense<0.000000e+00> : vector<32x128xf32>
    %10 = tpu.matmul %8, %9, %cst_9 {dimension_numbers = #tpu.dot_dimension_numbers<[1], [0], [0], [1], [0, 0, 1, 1], [], []>} : vector<32x128xf32>, vector<128x128xf32>, vector<32x128xf32> -> vector<32x128xf32>
    %cst_10 = arith.constant 9.99999993E-9 : f32
    %11 = vector.broadcast %cst_10 : f32 to vector<32x128xf32>
    %12 = arith.addf %10, %11 : vector<32x128xf32>
    %c0_11 = arith.constant 0 : index
    %c0_12 = arith.constant 0 : index
    %13 = vector.load %arg5[%c0_11, %c0_12] : memref<128x32xf32, #tpu.memory_space<vmem>>, vector<32x32xf32>
    %c32 = arith.constant 32 : index
    %c0_13 = arith.constant 0 : index
    %14 = vector.load %arg5[%c32, %c0_13] : memref<128x32xf32, #tpu.memory_space<vmem>>, vector<32x32xf32>
    %c64 = arith.constant 64 : index
    %c0_14 = arith.constant 0 : index
    %15 = vector.load %arg5[%c64, %c0_14] : memref<128x32xf32, #tpu.memory_space<vmem>>, vector<32x32xf32>
    %c96 = arith.constant 96 : index
    %c0_15 = arith.constant 0 : index
    %16 = vector.load %arg5[%c96, %c0_15] : memref<128x32xf32, #tpu.memory_space<vmem>>, vector<32x32xf32>
    %cst_16 = arith.constant dense<0.000000e+00> : vector<32x128xf32>
    %17 = tpu.matmul %13, %12, %cst_16 {dimension_numbers = #tpu.dot_dimension_numbers<[1], [0], [0], [1], [0, 0, 1, 1], [], []>} : vector<32x32xf32>, vector<32x128xf32>, vector<32x128xf32> -> vector<32x128xf32>
    %cst_17 = arith.constant dense<0.000000e+00> : vector<32x128xf32>
    %18 = tpu.matmul %14, %12, %cst_17 {dimension_numbers = #tpu.dot_dimension_numbers<[1], [0], [0], [1], [0, 0, 1, 1], [], []>} : vector<32x32xf32>, vector<32x128xf32>, vector<32x128xf32> -> vector<32x128xf32>
    %19 = tpu.concatenate %17, %18 in 1 : vector<32x128xf32>, vector<32x128xf32> -> vector<32x256xf32>
    %c0_18 = arith.constant 0 : index
    %c0_19 = arith.constant 0 : index
    %20 = vector.load %arg6[%c0_18, %c0_19] : memref<256x144xf32, #tpu.memory_space<vmem>>, vector<256x144xf32>
    %cst_20 = arith.constant dense<0.000000e+00> : vector<32x144xf32>
    %21 = tpu.matmul %19, %20, %cst_20 {dimension_numbers = #tpu.dot_dimension_numbers<[1], [0], [0], [1], [0, 0, 1, 1], [], []>} : vector<32x256xf32>, vector<256x144xf32>, vector<32x144xf32> -> vector<32x144xf32>
    %22 = tpu.iota {dimensions = array<i32: 1>} : vector<32x144xi32>
    %c72_i32 = arith.constant 72 : i32
    %23 = vector.broadcast %c72_i32 : i32 to vector<32x144xi32>
    %24 = arith.cmpi slt, %22, %23 : vector<32x144xi32>
    %cst_21 = arith.constant 2.000000e-08 : f32
    %cst_22 = arith.constant 9.99999993E-9 : f32
    %25 = vector.broadcast %cst_21 : f32 to vector<32x144xf32>
    %26 = vector.broadcast %cst_22 : f32 to vector<32x144xf32>
    %27 = arith.select %24, %25, %26 : vector<32x144xi1>, vector<32x144xf32>
    %28 = arith.addf %21, %27 : vector<32x144xf32>
    %c0_23 = arith.constant 0 : index
    %c0_24 = arith.constant 0 : index
    %29 = vector.load %arg7[%c0_23, %c0_24] : memref<144x128xf32, #tpu.memory_space<vmem>>, vector<144x128xf32>
    %cst_25 = arith.constant dense<0.000000e+00> : vector<32x128xf32>
    %30 = tpu.matmul %28, %29, %cst_25 {dimension_numbers = #tpu.dot_dimension_numbers<[1], [0], [0], [1], [0, 0, 1, 1], [], []>} : vector<32x144xf32>, vector<144x128xf32>, vector<32x128xf32> -> vector<32x128xf32>
    %c0_26 = arith.constant 0 : index
    %c0_27 = arith.constant 0 : index
    %31 = vector.load %arg8[%c0_26, %c0_27] : memref<144x128xf32, #tpu.memory_space<vmem>>, vector<144x128xf32>
    %cst_28 = arith.constant dense<0.000000e+00> : vector<32x128xf32>
    %32 = tpu.matmul %28, %31, %cst_28 {dimension_numbers = #tpu.dot_dimension_numbers<[1], [0], [0], [1], [0, 0, 1, 1], [], []>} : vector<32x144xf32>, vector<144x128xf32>, vector<32x128xf32> -> vector<32x128xf32>
    %cst_29 = arith.constant dense<0.000000e+00> : vector<32x128xf32>
    %33 = tpu.matmul %15, %30, %cst_29 {dimension_numbers = #tpu.dot_dimension_numbers<[1], [0], [0], [1], [0, 0, 1, 1], [], []>} : vector<32x32xf32>, vector<32x128xf32>, vector<32x128xf32> -> vector<32x128xf32>
    %cst_30 = arith.constant dense<0.000000e+00> : vector<32x128xf32>
    %34 = tpu.matmul %16, %32, %cst_30 {dimension_numbers = #tpu.dot_dimension_numbers<[1], [0], [0], [1], [0, 0, 1, 1], [], []>} : vector<32x32xf32>, vector<32x128xf32>, vector<32x128xf32> -> vector<32x128xf32>
    %35 = arith.addf %33, %34 : vector<32x128xf32>
    %36 = math.absf %35 : vector<32x128xf32>
    %37 = vector.shape_cast %8 : vector<32x128xf32> to vector<2x16x128xf32>
    %38 = vector.extract_strided_slice %37 {offsets = [0, 0, 0], sizes = [2, 8, 128], strides = [1, 1, 1]} : vector<2x16x128xf32> to vector<2x8x128xf32>
    %39 = vector.shape_cast %38 : vector<2x8x128xf32> to vector<16x128xf32>
    %40 = vector.extract_strided_slice %37 {offsets = [0, 8, 0], sizes = [2, 8, 128], strides = [1, 1, 1]} : vector<2x16x128xf32> to vector<2x8x128xf32>
    %41 = vector.shape_cast %40 : vector<2x8x128xf32> to vector<16x128xf32>
    %c0_31 = arith.constant 0 : index
    %c0_32 = arith.constant 0 : index
    %42 = vector.load %arg9[%c0_31, %c0_32] : memref<128x64xf32, #tpu.memory_space<vmem>>, vector<128x64xf32>
    %cst_33 = arith.constant dense<0.000000e+00> : vector<16x64xf32>
    %43 = tpu.matmul %39, %42, %cst_33 {dimension_numbers = #tpu.dot_dimension_numbers<[1], [0], [0], [1], [0, 0, 1, 1], [], []>} : vector<16x128xf32>, vector<128x64xf32>, vector<16x64xf32> -> vector<16x64xf32>
    %c0_34 = arith.constant 0 : index
    %c0_35 = arith.constant 0 : index
    %44 = vector.load %arg10[%c0_34, %c0_35] : memref<128x64xf32, #tpu.memory_space<vmem>>, vector<128x64xf32>
    %cst_36 = arith.constant dense<0.000000e+00> : vector<16x64xf32>
    %45 = tpu.matmul %41, %44, %cst_36 {dimension_numbers = #tpu.dot_dimension_numbers<[1], [0], [0], [1], [0, 0, 1, 1], [], []>} : vector<16x128xf32>, vector<128x64xf32>, vector<16x64xf32> -> vector<16x64xf32>
    %46 = arith.addf %43, %45 : vector<16x64xf32>
    %c0_37 = arith.constant 0 : index
    %c0_38 = arith.constant 0 : index
    %47 = vector.load %arg11[%c0_37, %c0_38] : memref<64x64xf32, #tpu.memory_space<vmem>>, vector<64x64xf32>
    %cst_39 = arith.constant dense<0.000000e+00> : vector<16x64xf32>
    %48 = tpu.matmul %46, %47, %cst_39 {dimension_numbers = #tpu.dot_dimension_numbers<[1], [0], [0], [1], [0, 0, 1, 1], [], []>} : vector<16x64xf32>, vector<64x64xf32>, vector<16x64xf32> -> vector<16x64xf32>
    %cst_40 = arith.constant 9.99999993E-9 : f32
    %49 = vector.broadcast %cst_40 : f32 to vector<16x64xf32>
    %50 = arith.addf %48, %49 : vector<16x64xf32>
    %c0_41 = arith.constant 0 : index
    %c0_42 = arith.constant 0 : index
    %51 = vector.load %arg12[%c0_41, %c0_42] : memref<64x16xf32, #tpu.memory_space<vmem>>, vector<16x16xf32>
    %c16 = arith.constant 16 : index
    %c0_43 = arith.constant 0 : index
    %52 = vector.load %arg12[%c16, %c0_43] : memref<64x16xf32, #tpu.memory_space<vmem>>, vector<16x16xf32>
    %c32_44 = arith.constant 32 : index
    %c0_45 = arith.constant 0 : index
    %53 = vector.load %arg12[%c32_44, %c0_45] : memref<64x16xf32, #tpu.memory_space<vmem>>, vector<16x16xf32>
    %c48 = arith.constant 48 : index
    %c0_46 = arith.constant 0 : index
    %54 = vector.load %arg12[%c48, %c0_46] : memref<64x16xf32, #tpu.memory_space<vmem>>, vector<16x16xf32>
    %cst_47 = arith.constant dense<0.000000e+00> : vector<16x64xf32>
    %55 = tpu.matmul %51, %50, %cst_47 {dimension_numbers = #tpu.dot_dimension_numbers<[1], [0], [0], [1], [0, 0, 1, 1], [], []>} : vector<16x16xf32>, vector<16x64xf32>, vector<16x64xf32> -> vector<16x64xf32>
    %cst_48 = arith.constant dense<0.000000e+00> : vector<16x64xf32>
    %56 = tpu.matmul %52, %50, %cst_48 {dimension_numbers = #tpu.dot_dimension_numbers<[1], [0], [0], [1], [0, 0, 1, 1], [], []>} : vector<16x16xf32>, vector<16x64xf32>, vector<16x64xf32> -> vector<16x64xf32>
    %57 = tpu.concatenate %55, %56 in 1 : vector<16x64xf32>, vector<16x64xf32> -> vector<16x128xf32>
    %c0_49 = arith.constant 0 : index
    %c0_50 = arith.constant 0 : index
    %58 = vector.load %arg13[%c0_49, %c0_50] : memref<128x80xf32, #tpu.memory_space<vmem>>, vector<128x80xf32>
    %cst_51 = arith.constant dense<0.000000e+00> : vector<16x80xf32>
    %59 = tpu.matmul %57, %58, %cst_51 {dimension_numbers = #tpu.dot_dimension_numbers<[1], [0], [0], [1], [0, 0, 1, 1], [], []>} : vector<16x128xf32>, vector<128x80xf32>, vector<16x80xf32> -> vector<16x80xf32>
    %60 = tpu.iota {dimensions = array<i32: 1>} : vector<16x80xi32>
    %c40_i32 = arith.constant 40 : i32
    %61 = vector.broadcast %c40_i32 : i32 to vector<16x80xi32>
    %62 = arith.cmpi slt, %60, %61 : vector<16x80xi32>
    %cst_52 = arith.constant 2.000000e-08 : f32
    %cst_53 = arith.constant 9.99999993E-9 : f32
    %63 = vector.broadcast %cst_52 : f32 to vector<16x80xf32>
    %64 = vector.broadcast %cst_53 : f32 to vector<16x80xf32>
    %65 = arith.select %62, %63, %64 : vector<16x80xi1>, vector<16x80xf32>
    %66 = arith.addf %59, %65 : vector<16x80xf32>
    %c0_54 = arith.constant 0 : index
    %c0_55 = arith.constant 0 : index
    %67 = vector.load %arg14[%c0_54, %c0_55] : memref<80x64xf32, #tpu.memory_space<vmem>>, vector<80x64xf32>
    %cst_56 = arith.constant dense<0.000000e+00> : vector<16x64xf32>
    %68 = tpu.matmul %66, %67, %cst_56 {dimension_numbers = #tpu.dot_dimension_numbers<[1], [0], [0], [1], [0, 0, 1, 1], [], []>} : vector<16x80xf32>, vector<80x64xf32>, vector<16x64xf32> -> vector<16x64xf32>
    %c0_57 = arith.constant 0 : index
    %c0_58 = arith.constant 0 : index
    %69 = vector.load %arg15[%c0_57, %c0_58] : memref<80x64xf32, #tpu.memory_space<vmem>>, vector<80x64xf32>
    %cst_59 = arith.constant dense<0.000000e+00> : vector<16x64xf32>
    %70 = tpu.matmul %66, %69, %cst_59 {dimension_numbers = #tpu.dot_dimension_numbers<[1], [0], [0], [1], [0, 0, 1, 1], [], []>} : vector<16x80xf32>, vector<80x64xf32>, vector<16x64xf32> -> vector<16x64xf32>
    %cst_60 = arith.constant dense<0.000000e+00> : vector<16x64xf32>
    %71 = tpu.matmul %53, %68, %cst_60 {dimension_numbers = #tpu.dot_dimension_numbers<[1], [0], [0], [1], [0, 0, 1, 1], [], []>} : vector<16x16xf32>, vector<16x64xf32>, vector<16x64xf32> -> vector<16x64xf32>
    %cst_61 = arith.constant dense<0.000000e+00> : vector<16x64xf32>
    %72 = tpu.matmul %54, %70, %cst_61 {dimension_numbers = #tpu.dot_dimension_numbers<[1], [0], [0], [1], [0, 0, 1, 1], [], []>} : vector<16x16xf32>, vector<16x64xf32>, vector<16x64xf32> -> vector<16x64xf32>
    %73 = arith.addf %71, %72 : vector<16x64xf32>
    %74 = math.absf %73 : vector<16x64xf32>
    %75 = tpu.concatenate %74, %74 in 1 : vector<16x64xf32>, vector<16x64xf32> -> vector<16x128xf32>
    %76 = vector.shape_cast %75 : vector<16x128xf32> to vector<2x8x128xf32>
    %77 = tpu.concatenate %76, %76 in 1 : vector<2x8x128xf32>, vector<2x8x128xf32> -> vector<2x16x128xf32>
    %78 = vector.shape_cast %77 : vector<2x16x128xf32> to vector<32x128xf32>
    %79 = arith.addf %8, %36 : vector<32x128xf32>
    %80 = arith.addf %79, %78 : vector<32x128xf32>
    %c0_62 = arith.constant 0 : index
    %c0_63 = arith.constant 0 : index
    %81 = vector.load %arg16[%c0_62, %c0_63] : memref<128x256xf32, #tpu.memory_space<vmem>>, vector<128x256xf32>
    %cst_64 = arith.constant dense<0.000000e+00> : vector<32x256xf32>
    %82 = tpu.matmul %80, %81, %cst_64 {dimension_numbers = #tpu.dot_dimension_numbers<[1], [0], [0], [1], [0, 0, 1, 1], [], []>} : vector<32x128xf32>, vector<128x256xf32>, vector<32x256xf32> -> vector<32x256xf32>
    %83 = vector.shape_cast %82 : vector<32x256xf32> to vector<2x16x256xf32>
    %c0_65 = arith.constant 0 : index
    %c0_66 = arith.constant 0 : index
    %c0_67 = arith.constant 0 : index
    %84 = vector.load %arg17[%c0_65, %c0_66, %c0_67] : memref<2x16x256xf32, #tpu.memory_space<vmem>>, vector<2x16x256xf32>
    tpu.vector_store %arg17[%c0_65, %c0_66, %c0_67], %83 {strides = array<i32>} : memref<2x16x256xf32, #tpu.memory_space<vmem>>, vector<2x16x256xf32>,
    return
  }
  func.func @transform_0(%arg0: i32) -> (i32, i32, i32) {
    %c0_i32 = arith.constant 0 : i32
    %c0_i32_0 = arith.constant 0 : i32
    %c0_i32_1 = arith.constant 0 : i32
    return %arg0, %c0_i32, %c0_i32_0 : i32, i32, i32
  }
  func.func @transform_1(%arg0: i32) -> (i32, i32) {
    %c0_i32 = arith.constant 0 : i32
    %c0_i32_0 = arith.constant 0 : i32
    %c0_i32_1 = arith.constant 0 : i32
    return %c0_i32, %c0_i32_0 : i32, i32
  }
  func.func @transform_2(%arg0: i32) -> (i32, i32) {
    %c0_i32 = arith.constant 0 : i32
    %c0_i32_0 = arith.constant 0 : i32
    %c0_i32_1 = arith.constant 0 : i32
    return %c0_i32, %c0_i32_0 : i32, i32
  }
  func.func @transform_3(%arg0: i32) -> (i32, i32) {
    %c0_i32 = arith.constant 0 : i32
    %c0_i32_0 = arith.constant 0 : i32
    %c0_i32_1 = arith.constant 0 : i32
    return %c0_i32, %c0_i32_0 : i32, i32
  }
  func.func @transform_4(%arg0: i32) -> (i32, i32) {
    %c0_i32 = arith.constant 0 : i32
    %c0_i32_0 = arith.constant 0 : i32
    %c0_i32_1 = arith.constant 0 : i32
    return %c0_i32, %c0_i32_0 : i32, i32
  }
  func.func @transform_5(%arg0: i32) -> (i32, i32) {
    %c0_i32 = arith.constant 0 : i32
    %c0_i32_0 = arith.constant 0 : i32
    %c0_i32_1 = arith.constant 0 : i32
    return %c0_i32, %c0_i32_0 : i32, i32
  }
  func.func @transform_6(%arg0: i32) -> (i32, i32) {
    %c0_i32 = arith.constant 0 : i32
    %c0_i32_0 = arith.constant 0 : i32
    %c0_i32_1 = arith.constant 0 : i32
    return %c0_i32, %c0_i32_0 : i32, i32
  }
  func.func @transform_7(%arg0: i32) -> (i32, i32) {
    %c0_i32 = arith.constant 0 : i32
    %c0_i32_0 = arith.constant 0 : i32
    %c0_i32_1 = arith.constant 0 : i32
    return %c0_i32, %c0_i32_0 : i32, i32
  }
  func.func @transform_8(%arg0: i32) -> (i32, i32) {
    %c0_i32 = arith.constant 0 : i32
    %c0_i32_0 = arith.constant 0 : i32
    %c0_i32_1 = arith.constant 0 : i32
    return %c0_i32, %c0_i32_0 : i32, i32
  }
  func.func @transform_9(%arg0: i32) -> (i32, i32) {
    %c0_i32 = arith.constant 0 : i32
    %c0_i32_0 = arith.constant 0 : i32
    %c0_i32_1 = arith.constant 0 : i32
    return %c0_i32, %c0_i32_0 : i32, i32
  }
  func.func @transform_10(%arg0: i32) -> (i32, i32) {
    %c0_i32 = arith.constant 0 : i32
    %c0_i32_0 = arith.constant 0 : i32
    %c0_i32_1 = arith.constant 0 : i32
    return %c0_i32, %c0_i32_0 : i32, i32
  }
  func.func @transform_11(%arg0: i32) -> (i32, i32) {
    %c0_i32 = arith.constant 0 : i32
    %c0_i32_0 = arith.constant 0 : i32
    %c0_i32_1 = arith.constant 0 : i32
    return %c0_i32, %c0_i32_0 : i32, i32
  }
  func.func @transform_12(%arg0: i32) -> (i32, i32) {
    %c0_i32 = arith.constant 0 : i32
    %c0_i32_0 = arith.constant 0 : i32
    %c0_i32_1 = arith.constant 0 : i32
    return %c0_i32, %c0_i32_0 : i32, i32
  }
  func.func @transform_13(%arg0: i32) -> (i32, i32) {
    %c0_i32 = arith.constant 0 : i32
    %c0_i32_0 = arith.constant 0 : i32
    %c0_i32_1 = arith.constant 0 : i32
    return %c0_i32, %c0_i32_0 : i32, i32
  }
  func.func @transform_14(%arg0: i32) -> (i32, i32) {
    %c0_i32 = arith.constant 0 : i32
    %c0_i32_0 = arith.constant 0 : i32
    %c0_i32_1 = arith.constant 0 : i32
    return %c0_i32, %c0_i32_0 : i32, i32
  }
  func.func @transform_15(%arg0: i32) -> (i32, i32) {
    %c0_i32 = arith.constant 0 : i32
    %c0_i32_0 = arith.constant 0 : i32
    %c0_i32_1 = arith.constant 0 : i32
    return %c0_i32, %c0_i32_0 : i32, i32
  }
  func.func @transform_16(%arg0: i32) -> (i32, i32, i32) {
    %c0_i32 = arith.constant 0 : i32
    %c0_i32_0 = arith.constant 0 : i32
    %c0_i32_1 = arith.constant 0 : i32
    return %arg0, %c0_i32, %c0_i32_0 : i32, i32, i32
  }
}

</mosaic_0001>

<llo_original>
// kernel: tile.8
$region0: #{tile.8}
  #allocation0 [shape = 's32[1]{0}', space=sflag, size = 0x4, scoped, tag = 'scoped memory for tile.8']
  %s0 = inlined_call_operand.vmem [shape: f32[8], index: 0, kind: input, shape index: {}]
  %s1 = inlined_call_operand.vmem [shape: f32[16,8], index: 1, kind: output, shape index: {}]
  // Predicated region
  $region2: #{tile.8} parent=0 // pred_check
    _
  $region3: #{tile.8} parent=0 // pred_check_branch
    %3 = sbr.rel (0) target = $region5
  $region4: #{tile.8} parent=0 // pred_region
    _
  $region5: #{tile.8} parent=0 // pred_fallthru
    _
  %v4 = vld [vmem:[%s0] ss:$0 sm:$0xff]
  %5 = vst [vmem:[%s1] sm:$0xff] %v4
  %s6 = scalar_lea.vmem %s1, 8
  %7 = vst [vmem:[%s6] sm:$0xff] %v4

// kernel: tile.9
$region0: #{tile.9}
  %s0 = inlined_call_operand.vmem [shape: f32[16,8], index: 0, kind: input, shape index: {}]
  %s1 = inlined_call_operand.vmem [shape: f32[1,128], index: 1, kind: output, shape index: {}]
  $region1: #{tile.9} parent=0
    #allocation0 [shape = 'u8[4096]{0}', space=vmem, size = 0x1000, scoped, tag = 'scoped mem for output reshape']
    %v2 = vld [vmem:[%s0] sm:$0x1]
    %vm3 = vcmask 64512
    %4 = vst.msk [vmem:[#allocation0] sm:$0x1] %vm3, %v2
    %s5 = scalar_lea.vmem %s0, 15
    %v6 = vld [vmem:[%s5] sm:$0x1]
    %7 = vrot.lane.b32.xlu0 %v6, 120
    %v8 = vpop.permute.xlu0 %7
    %vm9 = vcmask 1048512
    %10 = vst.msk [vmem:[#allocation0] sm:$0x1] %vm9, %v8
    %s11 = scalar_lea.vmem %s0, 14
    %v12 = vld [vmem:[%s11] sm:$0x1]
    %13 = vrot.lane.b32.xlu0 %v12, 112
    %v14 = vpop.permute.xlu0 %13
    %vm15 = vcmask 982912
    %16 = vst.msk [vmem:[#allocation0] sm:$0x1] %vm15, %v14
    %s17 = scalar_lea.vmem %s0, 13
    %v18 = vld [vmem:[%s17] sm:$0x1]
    %19 = vrot.lane.b32.xlu0 %v18, 104
    %v20 = vpop.permute.xlu0 %19
    %vm21 = vcmask 917312
    %22 = vst.msk [vmem:[#allocation0] sm:$0x1] %vm21, %v20
    %s23 = scalar_lea.vmem %s0, 12
    %v24 = vld [vmem:[%s23] sm:$0x1]
    %25 = vrot.lane.b32.xlu0 %v24, 96
    %v26 = vpop.permute.xlu0 %25
    %vm27 = vcmask 851712
    %28 = vst.msk [vmem:[#allocation0] sm:$0x1] %vm27, %v26
    %s29 = scalar_lea.vmem %s0, 11
    %v30 = vld [vmem:[%s29] sm:$0x1]
    %31 = vrot.lane.b32.xlu0 %v30, 88
    %v32 = vpop.permute.xlu0 %31
    %vm33 = vcmask 786112
    %34 = vst.msk [vmem:[#allocation0] sm:$0x1] %vm33, %v32
    %s35 = scalar_lea.vmem %s0, 10
    %v36 = vld [vmem:[%s35] sm:$0x1]
    %37 = vrot.lane.b32.xlu0 %v36, 80
    %v38 = vpop.permute.xlu0 %37
    %vm39 = vcmask 720512
    %40 = vst.msk [vmem:[#allocation0] sm:$0x1] %vm39, %v38
    %s41 = scalar_lea.vmem %s0, 9
    %v42 = vld [vmem:[%s41] sm:$0x1]
    %43 = vrot.lane.b32.xlu0 %v42, 72
    %v44 = vpop.permute.xlu0 %43
    %vm45 = vcmask 654912
    %46 = vst.msk [vmem:[#allocation0] sm:$0x1] %vm45, %v44
    %s47 = scalar_lea.vmem %s0, 8
    %v48 = vld [vmem:[%s47] sm:$0x1]
    %49 = vrot.lane.b32.xlu0 %v48, 64
    %v50 = vpop.permute.xlu0 %49
    %vm51 = vcmask 589312
    %52 = vst.msk [vmem:[#allocation0] sm:$0x1] %vm51, %v50
    %s53 = scalar_lea.vmem %s0, 7
    %v54 = vld [vmem:[%s53] sm:$0x1]
    %55 = vrot.lane.b32.xlu0 %v54, 56
    %v56 = vpop.permute.xlu0 %55
    %vm57 = vcmask 523712
    %58 = vst.msk [vmem:[#allocation0] sm:$0x1] %vm57, %v56
    %s59 = scalar_lea.vmem %s0, 6
    %v60 = vld [vmem:[%s59] sm:$0x1]
    %61 = vrot.lane.b32.xlu0 %v60, 48
    %v62 = vpop.permute.xlu0 %61
    %vm63 = vcmask 458112
    %64 = vst.msk [vmem:[#allocation0] sm:$0x1] %vm63, %v62
    %s65 = scalar_lea.vmem %s0, 5
    %v66 = vld [vmem:[%s65] sm:$0x1]
    %67 = vrot.lane.b32.xlu0 %v66, 40
    %v68 = vpop.permute.xlu0 %67
    %vm69 = vcmask 392512
    %70 = vst.msk [vmem:[#allocation0] sm:$0x1] %vm69, %v68
    %s71 = scalar_lea.vmem %s0, 4
    %v72 = vld [vmem:[%s71] sm:$0x1]
    %73 = vrot.lane.b32.xlu0 %v72, 32
    %v74 = vpop.permute.xlu0 %73
    %vm75 = vcmask 326912
    %76 = vst.msk [vmem:[#allocation0] sm:$0x1] %vm75, %v74
    %s77 = scalar_lea.vmem %s0, 3
    %v78 = vld [vmem:[%s77] sm:$0x1]
    %79 = vrot.lane.b32.xlu0 %v78, 24
    %v80 = vpop.permute.xlu0 %79
    %vm81 = vcmask 261312
    %82 = vst.msk [vmem:[#allocation0] sm:$0x1] %vm81, %v80
    %s83 = scalar_lea.vmem %s0, 2
    %v84 = vld [vmem:[%s83] sm:$0x1]
    %85 = vrot.lane.b32.xlu0 %v84, 16
    %v86 = vpop.permute.xlu0 %85
    %vm87 = vcmask 195712
    %88 = vst.msk [vmem:[#allocation0] sm:$0x1] %vm87, %v86
    %s89 = scalar_lea.vmem %s0, 1
    %v90 = vld [vmem:[%s89] sm:$0x1]
    %91 = vrot.lane.b32.xlu0 %v90, 8
    %v92 = vpop.permute.xlu0 %91
    %vm93 = vcmask 130112
    %94 = vst.msk [vmem:[#allocation0] sm:$0x1] %vm93, %v92
    %s96 = ssub.s32 2, 1
    %v97 = vld [vmem:[#allocation0] sm:%s96]
    %s99 = ssub.s32 2, 1
    %100 = vst [vmem:[%s1] sm:%s99] %v97

// kernel: spectral_transform_forward.1
$region0: #{spectral_transform_forward.1}
  #allocation0 [shape = 'u32[]', space=smem, size = 0x4, offset = 0x4, fixed_abs, tag = 'smem constant byte address 0x4 - core index']
  #allocation1 [shape = 'u32[72,128]{1,0:T(1,128)}', space=vmem, size = 0x9000, scoped, tag = 'internal scratch']
  %s0 = inlined_call_operand.vmem [shape: f32[2,16,128], index: 0, kind: input, shape index: {}]
  %s1 = inlined_call_operand.vmem [shape: f32[128,128], index: 1, kind: input, shape index: {}]
  %s2 = inlined_call_operand.vmem [shape: f32[1,128], index: 2, kind: input, shape index: {}]
  %s3 = inlined_call_operand.vmem [shape: f32[128,128], index: 3, kind: input, shape index: {}]
  %s4 = inlined_call_operand.vmem [shape: f32[128,32], index: 4, kind: input, shape index: {}]
  %s5 = inlined_call_operand.vmem [shape: f32[256,144], index: 5, kind: input, shape index: {}]
  %s6 = inlined_call_operand.vmem [shape: f32[144,128], index: 6, kind: input, shape index: {}]
  %s7 = inlined_call_operand.vmem [shape: f32[144,128], index: 7, kind: input, shape index: {}]
  %s8 = inlined_call_operand.vmem [shape: f32[128,64], index: 8, kind: input, shape index: {}]
  %s9 = inlined_call_operand.vmem [shape: f32[128,64], index: 9, kind: input, shape index: {}]
  %s10 = inlined_call_operand.vmem [shape: f32[64,64], index: 10, kind: input, shape index: {}]
  %s11 = inlined_call_operand.vmem [shape: f32[64,16], index: 11, kind: input, shape index: {}]
  %s12 = inlined_call_operand.vmem [shape: f32[128,80], index: 12, kind: input, shape index: {}]
  %s13 = inlined_call_operand.vmem [shape: f32[80,64], index: 13, kind: input, shape index: {}]
  %s14 = inlined_call_operand.vmem [shape: f32[80,64], index: 14, kind: input, shape index: {}]
  %s15 = inlined_call_operand.vmem [shape: f32[128,256], index: 15, kind: input, shape index: {}]
  %s16 = inlined_call_operand.vmem [shape: f32[2,16,256], index: 16, kind: output, shape index: {}]
  %s17 = sld [smem:[#allocation0]]
  $region74: #{spectral_transform_forward.1} parent=0
    _
  %s19 = ssub.s32 1, %s17
  %s20 = scalar_select 0, %s19, %s17
  // Predicated region
  $region2: #{spectral_transform_forward.1} parent=0 // pred_check
    _
  $region3: #{spectral_transform_forward.1} parent=0 // pred_check_branch
    %22 = sbr.rel (0) target = $region5
  $region4: #{spectral_transform_forward.1} parent=0 // pred_region
    _
  $region5: #{spectral_transform_forward.1} parent=0 // pred_fallthru
    _
  // Predicated region
  $region6: #{spectral_transform_forward.1} parent=0 // pred_check
    _
  $region7: #{spectral_transform_forward.1} parent=0 // pred_check_branch
    %24 = sbr.rel (0) target = $region9
  $region8: #{spectral_transform_forward.1} parent=0 // pred_region
    _
  $region9: #{spectral_transform_forward.1} parent=0 // pred_fallthru
    _
  // Predicated region
  $region10: #{spectral_transform_forward.1} parent=0 // pred_check
    _
  $region11: #{spectral_transform_forward.1} parent=0 // pred_check_branch
    %26 = sbr.rel (0) target = $region13
  $region12: #{spectral_transform_forward.1} parent=0 // pred_region
    _
  $region13: #{spectral_transform_forward.1} parent=0 // pred_fallthru
    _
  // Predicated region
  $region14: #{spectral_transform_forward.1} parent=0 // pred_check
    _
  $region15: #{spectral_transform_forward.1} parent=0 // pred_check_branch
    %28 = sbr.rel (0) target = $region17
  $region16: #{spectral_transform_forward.1} parent=0 // pred_region
    _
  $region17: #{spectral_transform_forward.1} parent=0 // pred_fallthru
    _
  // Predicated region
  $region18: #{spectral_transform_forward.1} parent=0 // pred_check
    _
  $region19: #{spectral_transform_forward.1} parent=0 // pred_check_branch
    %30 = sbr.rel (0) target = $region21
  $region20: #{spectral_transform_forward.1} parent=0 // pred_region
    _
  $region21: #{spectral_transform_forward.1} parent=0 // pred_fallthru
    _
  // Predicated region
  $region22: #{spectral_transform_forward.1} parent=0 // pred_check
    _
  $region23: #{spectral_transform_forward.1} parent=0 // pred_check_branch
    %32 = sbr.rel (0) target = $region25
  $region24: #{spectral_transform_forward.1} parent=0 // pred_region
    _
  $region25: #{spectral_transform_forward.1} parent=0 // pred_fallthru
    _
  // Predicated region
  $region26: #{spectral_transform_forward.1} parent=0 // pred_check
    _
  $region27: #{spectral_transform_forward.1} parent=0 // pred_check_branch
    %34 = sbr.rel (0) target = $region29
  $region28: #{spectral_transform_forward.1} parent=0 // pred_region
    _
  $region29: #{spectral_transform_forward.1} parent=0 // pred_fallthru
    _
  // Predicated region
  $region30: #{spectral_transform_forward.1} parent=0 // pred_check
    _
  $region31: #{spectral_transform_forward.1} parent=0 // pred_check_branch
    %36 = sbr.rel (0) target = $region33
  $region32: #{spectral_transform_forward.1} parent=0 // pred_region
    _
  $region33: #{spectral_transform_forward.1} parent=0 // pred_fallthru
    _
  // Predicated region
  $region34: #{spectral_transform_forward.1} parent=0 // pred_check
    _
  $region35: #{spectral_transform_forward.1} parent=0 // pred_check_branch
    %38 = sbr.rel (0) target = $region37
  $region36: #{spectral_transform_forward.1} parent=0 // pred_region
    _
  $region37: #{spectral_transform_forward.1} parent=0 // pred_fallthru
    _
  // Predicated region
  $region38: #{spectral_transform_forward.1} parent=0 // pred_check
    _
  $region39: #{spectral_transform_forward.1} parent=0 // pred_check_branch
    %40 = sbr.rel (0) target = $region41
  $region40: #{spectral_transform_forward.1} parent=0 // pred_region
    _
  $region41: #{spectral_transform_forward.1} parent=0 // pred_fallthru
    _
  // Predicated region
  $region42: #{spectral_transform_forward.1} parent=0 // pred_check
    _
  $region43: #{spectral_transform_forward.1} parent=0 // pred_check_branch
    %42 = sbr.rel (0) target = $region45
  $region44: #{spectral_transform_forward.1} parent=0 // pred_region
    _
  $region45: #{spectral_transform_forward.1} parent=0 // pred_fallthru
    _
  // Predicated region
  $region46: #{spectral_transform_forward.1} parent=0 // pred_check
    _
  $region47: #{spectral_transform_forward.1} parent=0 // pred_check_branch
    %44 = sbr.rel (0) target = $region49
  $region48: #{spectral_transform_forward.1} parent=0 // pred_region
    _
  $region49: #{spectral_transform_forward.1} parent=0 // pred_fallthru
    _
  // Predicated region
  $region50: #{spectral_transform_forward.1} parent=0 // pred_check
    _
  $region51: #{spectral_transform_forward.1} parent=0 // pred_check_branch
    %46 = sbr.rel (0) target = $region53
  $region52: #{spectral_transform_forward.1} parent=0 // pred_region
    _
  $region53: #{spectral_transform_forward.1} parent=0 // pred_fallthru
    _
  // Predicated region
  $region54: #{spectral_transform_forward.1} parent=0 // pred_check
    _
  $region55: #{spectral_transform_forward.1} parent=0 // pred_check_branch
    %48 = sbr.rel (0) target = $region57
  $region56: #{spectral_transform_forward.1} parent=0 // pred_region
    _
  $region57: #{spectral_transform_forward.1} parent=0 // pred_fallthru
    _
  // Predicated region
  $region58: #{spectral_transform_forward.1} parent=0 // pred_check
    _
  $region59: #{spectral_transform_forward.1} parent=0 // pred_check_branch
    %50 = sbr.rel (0) target = $region61
  $region60: #{spectral_transform_forward.1} parent=0 // pred_region
    _
  $region61: #{spectral_transform_forward.1} parent=0 // pred_fallthru
    _
  // Predicated region
  $region62: #{spectral_transform_forward.1} parent=0 // pred_check
    _
  $region63: #{spectral_transform_forward.1} parent=0 // pred_check_branch
    %52 = sbr.rel (0) target = $region65
  $region64: #{spectral_transform_forward.1} parent=0 // pred_region
    _
  $region65: #{spectral_transform_forward.1} parent=0 // pred_fallthru
    _
  %v53 = vld [vmem:[%s0] sm:$0xff]
  %v54 = vld [vmem:[%s0 + $0x8] sm:$0xff]
  %v55 = vld [vmem:[%s0 + $0x10] sm:$0xff]
  %v56 = vld [vmem:[%s0 + $0x18] sm:$0xff]
  %v57 = vld [vmem:[%s1] sm:$0xff]
  %v58 = vld [vmem:[%s1 + $0x8] sm:$0xff]
  %v59 = vld [vmem:[%s1 + $0x10] sm:$0xff]
  %v60 = vld [vmem:[%s1 + $0x18] sm:$0xff]
  %v61 = vld [vmem:[%s1 + $0x20] sm:$0xff]
  %v62 = vld [vmem:[%s1 + $0x28] sm:$0xff]
  %v63 = vld [vmem:[%s1 + $0x30] sm:$0xff]
  %v64 = vld [vmem:[%s1 + $0x38] sm:$0xff]
  %v65 = vld [vmem:[%s1 + $0x40] sm:$0xff]
  %v66 = vld [vmem:[%s1 + $0x48] sm:$0xff]
  %v67 = vld [vmem:[%s1 + $0x50] sm:$0xff]
  %v68 = vld [vmem:[%s1 + $0x58] sm:$0xff]
  %v69 = vld [vmem:[%s1 + $0x60] sm:$0xff]
  %v70 = vld [vmem:[%s1 + $0x68] sm:$0xff]
  %v71 = vld [vmem:[%s1 + $0x70] sm:$0xff]
  %v72 = vld [vmem:[%s1 + $0x78] sm:$0xff]
  %v73 = vld [vmem:[%s2] sm:$0x1]
  %v75 = vperm.slane %v73, 0
  %77 = vmatpush.msra.mxu0 %v72
  %78 = vmatpush.msra.mxu0 %v71
  %79 = vmatpush.msra.mxu0 %v70
  %80 = vmatpush.msra.mxu0 %v69
  %81 = vmatpush.msra.mxu0 %v68
  %82 = vmatpush.msra.mxu0 %v67
  %83 = vmatpush.msra.mxu0 %v66
  %84 = vmatpush.msra.mxu0 %v65
  %85 = vmatpush.msra.mxu0 %v64
  %86 = vmatpush.msra.mxu0 %v63
  %87 = vmatpush.msra.mxu0 %v62
  %88 = vmatpush.msra.mxu0 %v61
  %89 = vmatpush.msra.mxu0 %v60
  %90 = vmatpush.msra.mxu0 %v59
  %91 = vmatpush.msra.mxu0 %v58
  %92 = vmatpush.msra.mxu0 %v57
  %93 = vmatmul.f32.gmra.mxu0 %v53
  %v94 = vpop.f32.mrf.mxu0
  %v95 = vadd.f32 %v75, %v94
  %96 = vmatmul.f32.gmra.mxu0 %v54
  %v97 = vpop.f32.mrf.mxu0
  %v98 = vadd.f32 %v75, %v97
  %99 = vmatmul.f32.gmra.mxu0 %v55
  %v100 = vpop.f32.mrf.mxu0
  %v101 = vadd.f32 %v75, %v100
  %102 = vmatmul.f32.gmra.mxu0 %v56
  %v103 = vpop.f32.mrf.mxu0
  %v104 = vadd.f32 %v75, %v103
  %105 = vdwg.mxu0
  %v106 = vmax.f32 %v95, 0.0
  %v107 = vmax.f32 %v98, 0.0
  %v108 = vmax.f32 %v101, 0.0
  %v109 = vmax.f32 %v104, 0.0
  %v110 = vld [vmem:[%s3] sm:$0xff]
  %v111 = vld [vmem:[%s3 + $0x8] sm:$0xff]
  %v112 = vld [vmem:[%s3 + $0x10] sm:$0xff]
  %v113 = vld [vmem:[%s3 + $0x18] sm:$0xff]
  %v114 = vld [vmem:[%s3 + $0x20] sm:$0xff]
  %v115 = vld [vmem:[%s3 + $0x28] sm:$0xff]
  %v116 = vld [vmem:[%s3 + $0x30] sm:$0xff]
  %v117 = vld [vmem:[%s3 + $0x38] sm:$0xff]
  %v118 = vld [vmem:[%s3 + $0x40] sm:$0xff]
  %v119 = vld [vmem:[%s3 + $0x48] sm:$0xff]
  %v120 = vld [vmem:[%s3 + $0x50] sm:$0xff]
  %v121 = vld [vmem:[%s3 + $0x58] sm:$0xff]
  %v122 = vld [vmem:[%s3 + $0x60] sm:$0xff]
  %v123 = vld [vmem:[%s3 + $0x68] sm:$0xff]
  %v124 = vld [vmem:[%s3 + $0x70] sm:$0xff]
  %v125 = vld [vmem:[%s3 + $0x78] sm:$0xff]
  %126 = vmatpush.msra.mxu0 %v125
  %127 = vmatpush.msra.mxu0 %v124
  %128 = vmatpush.msra.mxu0 %v123
  %129 = vmatpush.msra.mxu0 %v122
  %130 = vmatpush.msra.mxu0 %v121
  %131 = vmatpush.msra.mxu0 %v120
  %132 = vmatpush.msra.mxu0 %v119
  %133 = vmatpush.msra.mxu0 %v118
  %134 = vmatpush.msra.mxu0 %v117
  %135 = vmatpush.msra.mxu0 %v116
  %136 = vmatpush.msra.mxu0 %v115
  %137 = vmatpush.msra.mxu0 %v114
  %138 = vmatpush.msra.mxu0 %v113
  %139 = vmatpush.msra.mxu0 %v112
  %140 = vmatpush.msra.mxu0 %v111
  %141 = vmatpush.msra.mxu0 %v110
  %142 = vmatmul.f32.gmra.mxu0 %v106
  %v143 = vpop.f32.mrf.mxu0
  %v144 = vadd.f32 1e-08, %v143
  %145 = vmatmul.f32.gmra.mxu0 %v107
  %v146 = vpop.f32.mrf.mxu0
  %v147 = vadd.f32 1e-08, %v146
  %148 = vmatmul.f32.gmra.mxu0 %v108
  %v149 = vpop.f32.mrf.mxu0
  %v150 = vadd.f32 1e-08, %v149
  %151 = vmatmul.f32.gmra.mxu0 %v109
  %v152 = vpop.f32.mrf.mxu0
  %v153 = vadd.f32 1e-08, %v152
  %154 = vdwg.mxu0
  %v155 = vld [vmem:[%s4] sm:$0xff]
  %v156 = vld [vmem:[%s4 + $0x8] sm:$0xff]
  %v157 = vld [vmem:[%s4 + $0x10] sm:$0xff]
  %v158 = vld [vmem:[%s4 + $0x18] sm:$0xff]
  %v159 = vld [vmem:[%s4 + $0x20] sm:$0xff]
  %v160 = vld [vmem:[%s4 + $0x28] sm:$0xff]
  %v161 = vld [vmem:[%s4 + $0x30] sm:$0xff]
  %v162 = vld [vmem:[%s4 + $0x38] sm:$0xff]
  %v163 = vld [vmem:[%s4 + $0x40] sm:$0xff]
  %v164 = vld [vmem:[%s4 + $0x48] sm:$0xff]
  %v165 = vld [vmem:[%s4 + $0x50] sm:$0xff]
  %v166 = vld [vmem:[%s4 + $0x58] sm:$0xff]
  %v167 = vld [vmem:[%s4 + $0x60] sm:$0xff]
  %v168 = vld [vmem:[%s4 + $0x68] sm:$0xff]
  %v169 = vld [vmem:[%s4 + $0x70] sm:$0xff]
  %v170 = vld [vmem:[%s4 + $0x78] sm:$0xff]
  %vm171 = vcmask 261120
  %v173 = vsel %vm171, %v155, 0
  %v176 = vsel %vm171, %v156, 0
  %v179 = vsel %vm171, %v157, 0
  %v182 = vsel %vm171, %v158, 0
  %184 = vmatpush.msra.mxu0 0.0
  %185 = vmatpush.msra.mxu0 0.0
  %186 = vmatpush.msra.mxu0 0.0
  %187 = vmatpush.msra.mxu0 0.0
  %188 = vmatpush.msra.mxu0 0.0
  %189 = vmatpush.msra.mxu0 0.0
  %190 = vmatpush.msra.mxu0 0.0
  %191 = vmatpush.msra.mxu0 0.0
  %192 = vmatpush.msra.mxu0 0.0
  %193 = vmatpush.msra.mxu0 0.0
  %194 = vmatpush.msra.mxu0 0.0
  %195 = vmatpush.msra.mxu0 0.0
  %196 = vmatpush.msra.mxu0 %v153
  %197 = vmatpush.msra.mxu0 %v150
  %198 = vmatpush.msra.mxu0 %v147
  %199 = vmatpush.msra.mxu0 %v144
  %200 = vmatmul.f32.gmra.mxu0 %v173
  %v201 = vpop.f32.mrf.mxu0
  %v202 = vadd.f32 0.0, %v201
  %203 = vmatmul.f32.gmra.mxu0 %v176
  %v204 = vpop.f32.mrf.mxu0
  %v205 = vadd.f32 0.0, %v204
  %206 = vmatmul.f32.gmra.mxu0 %v179
  %v207 = vpop.f32.mrf.mxu0
  %v208 = vadd.f32 0.0, %v207
  %209 = vmatmul.f32.gmra.mxu0 %v182
  %v210 = vpop.f32.mrf.mxu0
  %v211 = vadd.f32 0.0, %v210
  %212 = vdwg.mxu0
  %v214 = vsel %vm171, %v159, 0
  %v217 = vsel %vm171, %v160, 0
  %v220 = vsel %vm171, %v161, 0
  %v223 = vsel %vm171, %v162, 0
  %225 = vmatpush.msra.mxu0 0.0
  %226 = vmatpush.msra.mxu0 0.0
  %227 = vmatpush.msra.mxu0 0.0
  %228 = vmatpush.msra.mxu0 0.0
  %229 = vmatpush.msra.mxu0 0.0
  %230 = vmatpush.msra.mxu0 0.0
  %231 = vmatpush.msra.mxu0 0.0
  %232 = vmatpush.msra.mxu0 0.0
  %233 = vmatpush.msra.mxu0 0.0
  %234 = vmatpush.msra.mxu0 0.0
  %235 = vmatpush.msra.mxu0 0.0
  %236 = vmatpush.msra.mxu0 0.0
  %237 = vmatpush.msra.mxu0 %v153
  %238 = vmatpush.msra.mxu0 %v150
  %239 = vmatpush.msra.mxu0 %v147
  %240 = vmatpush.msra.mxu0 %v144
  %241 = vmatmul.f32.gmra.mxu0 %v214
  %v242 = vpop.f32.mrf.mxu0
  %v243 = vadd.f32 0.0, %v242
  %244 = vmatmul.f32.gmra.mxu0 %v217
  %v245 = vpop.f32.mrf.mxu0
  %v246 = vadd.f32 0.0, %v245
  %247 = vmatmul.f32.gmra.mxu0 %v220
  %v248 = vpop.f32.mrf.mxu0
  %v249 = vadd.f32 0.0, %v248
  %250 = vmatmul.f32.gmra.mxu0 %v223
  %v251 = vpop.f32.mrf.mxu0
  %v252 = vadd.f32 0.0, %v251
  %253 = vdwg.mxu0
  %v254 = vld [vmem:[%s5] sm:$0xff]
  %v255 = vld [vmem:[%s5 + $0x8] sm:$0xff]
  %v256 = vld [vmem:[%s5 + $0x10] sm:$0xff]
  %v257 = vld [vmem:[%s5 + $0x18] sm:$0xff]
  %v258 = vld [vmem:[%s5 + $0x20] sm:$0xff]
  %v259 = vld [vmem:[%s5 + $0x28] sm:$0xff]
  %v260 = vld [vmem:[%s5 + $0x30] sm:$0xff]
  %v261 = vld [vmem:[%s5 + $0x38] sm:$0xff]
  %v262 = vld [vmem:[%s5 + $0x40] sm:$0xff]
  %v263 = vld [vmem:[%s5 + $0x48] sm:$0xff]
  %v264 = vld [vmem:[%s5 + $0x50] sm:$0xff]
  %v265 = vld [vmem:[%s5 + $0x58] sm:$0xff]
  %v266 = vld [vmem:[%s5 + $0x60] sm:$0xff]
  %v267 = vld [vmem:[%s5 + $0x68] sm:$0xff]
  %v268 = vld [vmem:[%s5 + $0x70] sm:$0xff]
  %v269 = vld [vmem:[%s5 + $0x78] sm:$0xff]
  %v270 = vld [vmem:[%s5 + $0x80] sm:$0xff]
  %v271 = vld [vmem:[%s5 + $0x88] sm:$0xff]
  %v272 = vld [vmem:[%s5 + $0x90] sm:$0xff]
  %v273 = vld [vmem:[%s5 + $0x98] sm:$0xff]
  %v274 = vld [vmem:[%s5 + $0xa0] sm:$0xff]
  %v275 = vld [vmem:[%s5 + $0xa8] sm:$0xff]
  %v276 = vld [vmem:[%s5 + $0xb0] sm:$0xff]
  %v277 = vld [vmem:[%s5 + $0xb8] sm:$0xff]
  %v278 = vld [vmem:[%s5 + $0xc0] sm:$0xff]
  %v279 = vld [vmem:[%s5 + $0xc8] sm:$0xff]
  %v280 = vld [vmem:[%s5 + $0xd0] sm:$0xff]
  %v281 = vld [vmem:[%s5 + $0xd8] sm:$0xff]
  %v282 = vld [vmem:[%s5 + $0xe0] sm:$0xff]
  %v283 = vld [vmem:[%s5 + $0xe8] sm:$0xff]
  %v284 = vld [vmem:[%s5 + $0xf0] sm:$0xff]
  %v285 = vld [vmem:[%s5 + $0xf8] sm:$0xff]
  %v286 = vld [vmem:[%s5 + $0x100] sm:$0xff]
  %v287 = vld [vmem:[%s5 + $0x108] sm:$0xff]
  %v288 = vld [vmem:[%s5 + $0x110] sm:$0xff]
  %v289 = vld [vmem:[%s5 + $0x118] sm:$0xff]
  %v290 = vld [vmem:[%s5 + $0x120] sm:$0xff]
  %v291 = vld [vmem:[%s5 + $0x128] sm:$0xff]
  %v292 = vld [vmem:[%s5 + $0x130] sm:$0xff]
  %v293 = vld [vmem:[%s5 + $0x138] sm:$0xff]
  %v294 = vld [vmem:[%s5 + $0x140] sm:$0xff]
  %v295 = vld [vmem:[%s5 + $0x148] sm:$0xff]
  %v296 = vld [vmem:[%s5 + $0x150] sm:$0xff]
  %v297 = vld [vmem:[%s5 + $0x158] sm:$0xff]
  %v298 = vld [vmem:[%s5 + $0x160] sm:$0xff]
  %v299 = vld [vmem:[%s5 + $0x168] sm:$0xff]
  %v300 = vld [vmem:[%s5 + $0x170] sm:$0xff]
  %v301 = vld [vmem:[%s5 + $0x178] sm:$0xff]
  %v302 = vld [vmem:[%s5 + $0x180] sm:$0xff]
  %v303 = vld [vmem:[%s5 + $0x188] sm:$0xff]
  %v304 = vld [vmem:[%s5 + $0x190] sm:$0xff]
  %v305 = vld [vmem:[%s5 + $0x198] sm:$0xff]
  %v306 = vld [vmem:[%s5 + $0x1a0] sm:$0xff]
  %v307 = vld [vmem:[%s5 + $0x1a8] sm:$0xff]
  %v308 = vld [vmem:[%s5 + $0x1b0] sm:$0xff]
  %v309 = vld [vmem:[%s5 + $0x1b8] sm:$0xff]
  %v310 = vld [vmem:[%s5 + $0x1c0] sm:$0xff]
  %v311 = vld [vmem:[%s5 + $0x1c8] sm:$0xff]
  %v312 = vld [vmem:[%s5 + $0x1d0] sm:$0xff]
  %v313 = vld [vmem:[%s5 + $0x1d8] sm:$0xff]
  %v314 = vld [vmem:[%s5 + $0x1e0] sm:$0xff]
  %v315 = vld [vmem:[%s5 + $0x1e8] sm:$0xff]
  %v316 = vld [vmem:[%s5 + $0x1f0] sm:$0xff]
  %v317 = vld [vmem:[%s5 + $0x1f8] sm:$0xff]
  %v318 = vlaneseq
  %v319 = vand.u32 %v318, 127
  %v320 = vadd.s32 %v319, 128
  %vm321 = vcmp.lt.s32.totalorder %v319, 72
  %vm322 = vcmp.lt.s32.totalorder %v320, 72
  %v323 = vsel %vm321, 2e-08, 1e-08
  %v324 = vsel %vm322, 2e-08, 1e-08
  %325 = vmatpush.msra.mxu0 %v284
  %326 = vmatpush.msra.mxu0 %v282
  %327 = vmatpush.msra.mxu0 %v280
  %328 = vmatpush.msra.mxu0 %v278
  %329 = vmatpush.msra.mxu0 %v276
  %330 = vmatpush.msra.mxu0 %v274
  %331 = vmatpush.msra.mxu0 %v272
  %332 = vmatpush.msra.mxu0 %v270
  %333 = vmatpush.msra.mxu0 %v268
  %334 = vmatpush.msra.mxu0 %v266
  %335 = vmatpush.msra.mxu0 %v264
  %336 = vmatpush.msra.mxu0 %v262
  %337 = vmatpush.msra.mxu0 %v260
  %338 = vmatpush.msra.mxu0 %v258
  %339 = vmatpush.msra.mxu0 %v256
  %340 = vmatpush.msra.mxu0 %v254
  %341 = vmatmul.f32.gmra.mxu0 %v202
  %v342 = vpop.f32.mrf.mxu0
  %v343 = vadd.f32 %v323, %v342
  %344 = vmatmul.f32.gmra.mxu0 %v205
  %v345 = vpop.f32.mrf.mxu0
  %v346 = vadd.f32 %v323, %v345
  %347 = vmatmul.f32.gmra.mxu0 %v208
  %v348 = vpop.f32.mrf.mxu0
  %v349 = vadd.f32 %v323, %v348
  %350 = vmatmul.f32.gmra.mxu0 %v211
  %v351 = vpop.f32.mrf.mxu0
  %v352 = vadd.f32 %v323, %v351
  %353 = vdwg.mxu0
  %354 = vmatpush.msra.mxu0 %v316
  %355 = vmatpush.msra.mxu0 %v314
  %356 = vmatpush.msra.mxu0 %v312
  %357 = vmatpush.msra.mxu0 %v310
  %358 = vmatpush.msra.mxu0 %v308
  %359 = vmatpush.msra.mxu0 %v306
  %360 = vmatpush.msra.mxu0 %v304
  %361 = vmatpush.msra.mxu0 %v302
  %362 = vmatpush.msra.mxu0 %v300
  %363 = vmatpush.msra.mxu0 %v298
  %364 = vmatpush.msra.mxu0 %v296
  %365 = vmatpush.msra.mxu0 %v294
  %366 = vmatpush.msra.mxu0 %v292
  %367 = vmatpush.msra.mxu0 %v290
  %368 = vmatpush.msra.mxu0 %v288
  %369 = vmatpush.msra.mxu0 %v286
  %370 = vmatmul.f32.gmra.mxu0 %v243
  %v371 = vpop.f32.mrf.mxu0
  %v372 = vadd.f32 %v343, %v371
  %373 = vmatmul.f32.gmra.mxu0 %v246
  %v374 = vpop.f32.mrf.mxu0
  %v375 = vadd.f32 %v346, %v374
  %376 = vmatmul.f32.gmra.mxu0 %v249
  %v377 = vpop.f32.mrf.mxu0
  %v378 = vadd.f32 %v349, %v377
  %379 = vmatmul.f32.gmra.mxu0 %v252
  %v380 = vpop.f32.mrf.mxu0
  %v381 = vadd.f32 %v352, %v380
  %382 = vdwg.mxu0
  %383 = vmatpush.msra.mxu0 %v285
  %384 = vmatpush.msra.mxu0 %v283
  %385 = vmatpush.msra.mxu0 %v281
  %386 = vmatpush.msra.mxu0 %v279
  %387 = vmatpush.msra.mxu0 %v277
  %388 = vmatpush.msra.mxu0 %v275
  %389 = vmatpush.msra.mxu0 %v273
  %390 = vmatpush.msra.mxu0 %v271
  %391 = vmatpush.msra.mxu0 %v269
  %392 = vmatpush.msra.mxu0 %v267
  %393 = vmatpush.msra.mxu0 %v265
  %394 = vmatpush.msra.mxu0 %v263
  %395 = vmatpush.msra.mxu0 %v261
  %396 = vmatpush.msra.mxu0 %v259
  %397 = vmatpush.msra.mxu0 %v257
  %398 = vmatpush.msra.mxu0 %v255
  %399 = vmatmul.f32.gmra.mxu0 %v202
  %v400 = vpop.f32.mrf.mxu0
  %v401 = vadd.f32 %v324, %v400
  %402 = vmatmul.f32.gmra.mxu0 %v205
  %v403 = vpop.f32.mrf.mxu0
  %v404 = vadd.f32 %v324, %v403
  %405 = vmatmul.f32.gmra.mxu0 %v208
  %v406 = vpop.f32.mrf.mxu0
  %v407 = vadd.f32 %v324, %v406
  %408 = vmatmul.f32.gmra.mxu0 %v211
  %v409 = vpop.f32.mrf.mxu0
  %v410 = vadd.f32 %v324, %v409
  %411 = vdwg.mxu0
  %412 = vmatpush.msra.mxu0 %v317
  %413 = vmatpush.msra.mxu0 %v315
  %414 = vmatpush.msra.mxu0 %v313
  %415 = vmatpush.msra.mxu0 %v311
  %416 = vmatpush.msra.mxu0 %v309
  %417 = vmatpush.msra.mxu0 %v307
  %418 = vmatpush.msra.mxu0 %v305
  %419 = vmatpush.msra.mxu0 %v303
  %420 = vmatpush.msra.mxu0 %v301
  %421 = vmatpush.msra.mxu0 %v299
  %422 = vmatpush.msra.mxu0 %v297
  %423 = vmatpush.msra.mxu0 %v295
  %424 = vmatpush.msra.mxu0 %v293
  %425 = vmatpush.msra.mxu0 %v291
  %426 = vmatpush.msra.mxu0 %v289
  %427 = vmatpush.msra.mxu0 %v287
  %428 = vmatmul.f32.gmra.mxu0 %v243
  %v429 = vpop.f32.mrf.mxu0
  %v430 = vadd.f32 %v401, %v429
  %431 = vmatmul.f32.gmra.mxu0 %v246
  %v432 = vpop.f32.mrf.mxu0
  %v433 = vadd.f32 %v404, %v432
  %434 = vmatmul.f32.gmra.mxu0 %v249
  %v435 = vpop.f32.mrf.mxu0
  %v436 = vadd.f32 %v407, %v435
  %437 = vmatmul.f32.gmra.mxu0 %v252
  %v438 = vpop.f32.mrf.mxu0
  %v439 = vadd.f32 %v410, %v438
  %440 = vdwg.mxu0
  %v441 = vld [vmem:[%s6] sm:$0xff]
  %v442 = vld [vmem:[%s6 + $0x8] sm:$0xff]
  %v443 = vld [vmem:[%s6 + $0x10] sm:$0xff]
  %v444 = vld [vmem:[%s6 + $0x18] sm:$0xff]
  %v445 = vld [vmem:[%s6 + $0x20] sm:$0xff]
  %v446 = vld [vmem:[%s6 + $0x28] sm:$0xff]
  %v447 = vld [vmem:[%s6 + $0x30] sm:$0xff]
  %v448 = vld [vmem:[%s6 + $0x38] sm:$0xff]
  %v449 = vld [vmem:[%s6 + $0x40] sm:$0xff]
  %v450 = vld [vmem:[%s6 + $0x48] sm:$0xff]
  %v451 = vld [vmem:[%s6 + $0x50] sm:$0xff]
  %v452 = vld [vmem:[%s6 + $0x58] sm:$0xff]
  %v453 = vld [vmem:[%s6 + $0x60] sm:$0xff]
  %v454 = vld [vmem:[%s6 + $0x68] sm:$0xff]
  %v455 = vld [vmem:[%s6 + $0x70] sm:$0xff]
  %v456 = vld [vmem:[%s6 + $0x78] sm:$0xff]
  %v457 = vld [vmem:[%s6 + $0x80] sm:$0xff]
  %v458 = vld [vmem:[%s6 + $0x88] sm:$0xff]
  %vm459 = vcmask 130048
  %v461 = vsel %vm459, %v430, 0
  %v464 = vsel %vm459, %v433, 0
  %v467 = vsel %vm459, %v436, 0
  %v470 = vsel %vm459, %v439, 0
  %472 = vmatpush.msra.mxu0 %v456
  %473 = vmatpush.msra.mxu0 %v455
  %474 = vmatpush.msra.mxu0 %v454
  %475 = vmatpush.msra.mxu0 %v453
  %476 = vmatpush.msra.mxu0 %v452
  %477 = vmatpush.msra.mxu0 %v451
  %478 = vmatpush.msra.mxu0 %v450
  %479 = vmatpush.msra.mxu0 %v449
  %480 = vmatpush.msra.mxu0 %v448
  %481 = vmatpush.msra.mxu0 %v447
  %482 = vmatpush.msra.mxu0 %v446
  %483 = vmatpush.msra.mxu0 %v445
  %484 = vmatpush.msra.mxu0 %v444
  %485 = vmatpush.msra.mxu0 %v443
  %486 = vmatpush.msra.mxu0 %v442
  %487 = vmatpush.msra.mxu0 %v441
  %488 = vmatmul.f32.gmra.mxu0 %v372
  %v489 = vpop.f32.mrf.mxu0
  %v490 = vadd.f32 0.0, %v489
  %491 = vmatmul.f32.gmra.mxu0 %v375
  %v492 = vpop.f32.mrf.mxu0
  %v493 = vadd.f32 0.0, %v492
  %494 = vmatmul.f32.gmra.mxu0 %v378
  %v495 = vpop.f32.mrf.mxu0
  %v496 = vadd.f32 0.0, %v495
  %497 = vmatmul.f32.gmra.mxu0 %v381
  %v498 = vpop.f32.mrf.mxu0
  %v499 = vadd.f32 0.0, %v498
  %500 = vdwg.mxu0
  %501 = vmatpush.msra.mxu0 0.0
  %502 = vmatpush.msra.mxu0 0.0
  %503 = vmatpush.msra.mxu0 0.0
  %504 = vmatpush.msra.mxu0 0.0
  %505 = vmatpush.msra.mxu0 0.0
  %506 = vmatpush.msra.mxu0 0.0
  %507 = vmatpush.msra.mxu0 0.0
  %508 = vmatpush.msra.mxu0 0.0
  %509 = vmatpush.msra.mxu0 0.0
  %510 = vmatpush.msra.mxu0 0.0
  %511 = vmatpush.msra.mxu0 0.0
  %512 = vmatpush.msra.mxu0 0.0
  %513 = vmatpush.msra.mxu0 0.0
  %514 = vmatpush.msra.mxu0 0.0
  %515 = vmatpush.msra.mxu0 %v458
  %516 = vmatpush.msra.mxu0 %v457
  %517 = vmatmul.f32.gmra.mxu0 %v461
  %v518 = vpop.f32.mrf.mxu0
  %v519 = vadd.f32 %v490, %v518
  %520 = vmatmul.f32.gmra.mxu0 %v464
  %v521 = vpop.f32.mrf.mxu0
  %v522 = vadd.f32 %v493, %v521
  %523 = vmatmul.f32.gmra.mxu0 %v467
  %v524 = vpop.f32.mrf.mxu0
  %v525 = vadd.f32 %v496, %v524
  %526 = vmatmul.f32.gmra.mxu0 %v470
  %v527 = vpop.f32.mrf.mxu0
  %v528 = vadd.f32 %v499, %v527
  %529 = vdwg.mxu0
  %v530 = vld [vmem:[%s7] sm:$0xff]
  %v531 = vld [vmem:[%s7 + $0x8] sm:$0xff]
  %v532 = vld [vmem:[%s7 + $0x10] sm:$0xff]
  %v533 = vld [vmem:[%s7 + $0x18] sm:$0xff]
  %v534 = vld [vmem:[%s7 + $0x20] sm:$0xff]
  %v535 = vld [vmem:[%s7 + $0x28] sm:$0xff]
  %v536 = vld [vmem:[%s7 + $0x30] sm:$0xff]
  %v537 = vld [vmem:[%s7 + $0x38] sm:$0xff]
  %v538 = vld [vmem:[%s7 + $0x40] sm:$0xff]
  %v539 = vld [vmem:[%s7 + $0x48] sm:$0xff]
  %v540 = vld [vmem:[%s7 + $0x50] sm:$0xff]
  %v541 = vld [vmem:[%s7 + $0x58] sm:$0xff]
  %v542 = vld [vmem:[%s7 + $0x60] sm:$0xff]
  %v543 = vld [vmem:[%s7 + $0x68] sm:$0xff]
  %v544 = vld [vmem:[%s7 + $0x70] sm:$0xff]
  %v545 = vld [vmem:[%s7 + $0x78] sm:$0xff]
  %v546 = vld [vmem:[%s7 + $0x80] sm:$0xff]
  %v547 = vld [vmem:[%s7 + $0x88] sm:$0xff]
  %548 = vmatpush.msra.mxu0 %v545
  %549 = vmatpush.msra.mxu0 %v544
  %550 = vmatpush.msra.mxu0 %v543
  %551 = vmatpush.msra.mxu0 %v542
  %552 = vmatpush.msra.mxu0 %v541
  %553 = vmatpush.msra.mxu0 %v540
  %554 = vmatpush.msra.mxu0 %v539
  %555 = vmatpush.msra.mxu0 %v538
  %556 = vmatpush.msra.mxu0 %v537
  %557 = vmatpush.msra.mxu0 %v536
  %558 = vmatpush.msra.mxu0 %v535
  %559 = vmatpush.msra.mxu0 %v534
  %560 = vmatpush.msra.mxu0 %v533
  %561 = vmatpush.msra.mxu0 %v532
  %562 = vmatpush.msra.mxu0 %v531
  %563 = vmatpush.msra.mxu0 %v530
  %564 = vmatmul.f32.gmra.mxu0 %v372
  %v565 = vpop.f32.mrf.mxu0
  %v566 = vadd.f32 0.0, %v565
  %567 = vmatmul.f32.gmra.mxu0 %v375
  %v568 = vpop.f32.mrf.mxu0
  %v569 = vadd.f32 0.0, %v568
  %570 = vmatmul.f32.gmra.mxu0 %v378
  %v571 = vpop.f32.mrf.mxu0
  %v572 = vadd.f32 0.0, %v571
  %573 = vmatmul.f32.gmra.mxu0 %v381
  %v574 = vpop.f32.mrf.mxu0
  %v575 = vadd.f32 0.0, %v574
  %576 = vdwg.mxu0
  %577 = vmatpush.msra.mxu0 0.0
  %578 = vmatpush.msra.mxu0 0.0
  %579 = vmatpush.msra.mxu0 0.0
  %580 = vmatpush.msra.mxu0 0.0
  %581 = vmatpush.msra.mxu0 0.0
  %582 = vmatpush.msra.mxu0 0.0
  %583 = vmatpush.msra.mxu0 0.0
  %584 = vmatpush.msra.mxu0 0.0
  %585 = vmatpush.msra.mxu0 0.0
  %586 = vmatpush.msra.mxu0 0.0
  %587 = vmatpush.msra.mxu0 0.0
  %588 = vmatpush.msra.mxu0 0.0
  %589 = vmatpush.msra.mxu0 0.0
  %590 = vmatpush.msra.mxu0 0.0
  %591 = vmatpush.msra.mxu0 %v547
  %592 = vmatpush.msra.mxu0 %v546
  %593 = vmatmul.f32.gmra.mxu0 %v461
  %v594 = vpop.f32.mrf.mxu0
  %v595 = vadd.f32 %v566, %v594
  %596 = vmatmul.f32.gmra.mxu0 %v464
  %v597 = vpop.f32.mrf.mxu0
  %v598 = vadd.f32 %v569, %v597
  %599 = vmatmul.f32.gmra.mxu0 %v467
  %v600 = vpop.f32.mrf.mxu0
  %v601 = vadd.f32 %v572, %v600
  %602 = vmatmul.f32.gmra.mxu0 %v470
  %v603 = vpop.f32.mrf.mxu0
  %v604 = vadd.f32 %v575, %v603
  %605 = vdwg.mxu0
  %v607 = vsel %vm171, %v167, 0
  %v610 = vsel %vm171, %v168, 0
  %v613 = vsel %vm171, %v169, 0
  %v616 = vsel %vm171, %v170, 0
  %618 = vmatpush.msra.mxu0 0.0
  %619 = vmatpush.msra.mxu0 0.0
  %620 = vmatpush.msra.mxu0 0.0
  %621 = vmatpush.msra.mxu0 0.0
  %622 = vmatpush.msra.mxu0 0.0
  %623 = vmatpush.msra.mxu0 0.0
  %624 = vmatpush.msra.mxu0 0.0
  %625 = vmatpush.msra.mxu0 0.0
  %626 = vmatpush.msra.mxu0 0.0
  %627 = vmatpush.msra.mxu0 0.0
  %628 = vmatpush.msra.mxu0 0.0
  %629 = vmatpush.msra.mxu0 0.0
  %630 = vmatpush.msra.mxu0 %v604
  %631 = vmatpush.msra.mxu0 %v601
  %632 = vmatpush.msra.mxu0 %v598
  %633 = vmatpush.msra.mxu0 %v595
  %634 = vmatmul.f32.gmra.mxu0 %v607
  %v635 = vpop.f32.mrf.mxu0
  %v636 = vadd.f32 0.0, %v635
  %637 = vmatmul.f32.gmra.mxu0 %v610
  %v638 = vpop.f32.mrf.mxu0
  %v639 = vadd.f32 0.0, %v638
  %640 = vmatmul.f32.gmra.mxu0 %v613
  %v641 = vpop.f32.mrf.mxu0
  %v642 = vadd.f32 0.0, %v641
  %643 = vmatmul.f32.gmra.mxu0 %v616
  %v644 = vpop.f32.mrf.mxu0
  %v645 = vadd.f32 0.0, %v644
  %646 = vdwg.mxu0
  %v648 = vsel %vm171, %v163, 0
  %v651 = vsel %vm171, %v164, 0
  %v654 = vsel %vm171, %v165, 0
  %v657 = vsel %vm171, %v166, 0
  %659 = vmatpush.msra.mxu0 0.0
  %660 = vmatpush.msra.mxu0 0.0
  %661 = vmatpush.msra.mxu0 0.0
  %662 = vmatpush.msra.mxu0 0.0
  %663 = vmatpush.msra.mxu0 0.0
  %664 = vmatpush.msra.mxu0 0.0
  %665 = vmatpush.msra.mxu0 0.0
  %666 = vmatpush.msra.mxu0 0.0
  %667 = vmatpush.msra.mxu0 0.0
  %668 = vmatpush.msra.mxu0 0.0
  %669 = vmatpush.msra.mxu0 0.0
  %670 = vmatpush.msra.mxu0 0.0
  %671 = vmatpush.msra.mxu0 %v528
  %672 = vmatpush.msra.mxu0 %v525
  %673 = vmatpush.msra.mxu0 %v522
  %674 = vmatpush.msra.mxu0 %v519
  %675 = vmatmul.f32.gmra.mxu0 %v648
  %v676 = vpop.f32.mrf.mxu0
  %v677 = vadd.f32 %v636, %v676
  %678 = vmatmul.f32.gmra.mxu0 %v651
  %v679 = vpop.f32.mrf.mxu0
  %v680 = vadd.f32 %v639, %v679
  %681 = vmatmul.f32.gmra.mxu0 %v654
  %v682 = vpop.f32.mrf.mxu0
  %v683 = vadd.f32 %v642, %v682
  %684 = vmatmul.f32.gmra.mxu0 %v657
  %v685 = vpop.f32.mrf.mxu0
  %v686 = vadd.f32 %v645, %v685
  %687 = vdwg.mxu0
  %v688 = vand.u32 2147483647, %v677
  %v689 = vand.u32 2147483647, %v680
  %v690 = vand.u32 2147483647, %v683
  %v691 = vand.u32 2147483647, %v686
  %v692 = vld [vmem:[%s8] sm:$0xff]
  %v693 = vld [vmem:[%s8 + $0x8] sm:$0xff]
  %v694 = vld [vmem:[%s8 + $0x10] sm:$0xff]
  %v695 = vld [vmem:[%s8 + $0x18] sm:$0xff]
  %v696 = vld [vmem:[%s8 + $0x20] sm:$0xff]
  %v697 = vld [vmem:[%s8 + $0x28] sm:$0xff]
  %v698 = vld [vmem:[%s8 + $0x30] sm:$0xff]
  %v699 = vld [vmem:[%s8 + $0x38] sm:$0xff]
  %v700 = vld [vmem:[%s8 + $0x40] sm:$0xff]
  %v701 = vld [vmem:[%s8 + $0x48] sm:$0xff]
  %v702 = vld [vmem:[%s8 + $0x50] sm:$0xff]
  %v703 = vld [vmem:[%s8 + $0x58] sm:$0xff]
  %v704 = vld [vmem:[%s8 + $0x60] sm:$0xff]
  %v705 = vld [vmem:[%s8 + $0x68] sm:$0xff]
  %v706 = vld [vmem:[%s8 + $0x70] sm:$0xff]
  %v707 = vld [vmem:[%s8 + $0x78] sm:$0xff]
  %v708 = vld [vmem:[%s9] sm:$0xff]
  %v709 = vld [vmem:[%s9 + $0x8] sm:$0xff]
  %v710 = vld [vmem:[%s9 + $0x10] sm:$0xff]
  %v711 = vld [vmem:[%s9 + $0x18] sm:$0xff]
  %v712 = vld [vmem:[%s9 + $0x20] sm:$0xff]
  %v713 = vld [vmem:[%s9 + $0x28] sm:$0xff]
  %v714 = vld [vmem:[%s9 + $0x30] sm:$0xff]
  %v715 = vld [vmem:[%s9 + $0x38] sm:$0xff]
  %v716 = vld [vmem:[%s9 + $0x40] sm:$0xff]
  %v717 = vld [vmem:[%s9 + $0x48] sm:$0xff]
  %v718 = vld [vmem:[%s9 + $0x50] sm:$0xff]
  %v719 = vld [vmem:[%s9 + $0x58] sm:$0xff]
  %v720 = vld [vmem:[%s9 + $0x60] sm:$0xff]
  %v721 = vld [vmem:[%s9 + $0x68] sm:$0xff]
  %v722 = vld [vmem:[%s9 + $0x70] sm:$0xff]
  %v723 = vld [vmem:[%s9 + $0x78] sm:$0xff]
  %724 = vmatpush.msra.mxu0 %v723
  %725 = vmatpush.msra.mxu0 %v722
  %726 = vmatpush.msra.mxu0 %v721
  %727 = vmatpush.msra.mxu0 %v720
  %728 = vmatpush.msra.mxu0 %v719
  %729 = vmatpush.msra.mxu0 %v718
  %730 = vmatpush.msra.mxu0 %v717
  %731 = vmatpush.msra.mxu0 %v716
  %732 = vmatpush.msra.mxu0 %v715
  %733 = vmatpush.msra.mxu0 %v714
  %734 = vmatpush.msra.mxu0 %v713
  %735 = vmatpush.msra.mxu0 %v712
  %736 = vmatpush.msra.mxu0 %v711
  %737 = vmatpush.msra.mxu0 %v710
  %738 = vmatpush.msra.mxu0 %v709
  %739 = vmatpush.msra.mxu0 %v708
  %740 = vmatmul.f32.gmra.mxu0 %v107
  %v741 = vpop.f32.mrf.mxu0
  %v742 = vadd.f32 0.0, %v741
  %743 = vmatmul.f32.gmra.mxu0 %v109
  %v744 = vpop.f32.mrf.mxu0
  %v745 = vadd.f32 0.0, %v744
  %746 = vdwg.mxu0
  %747 = vmatpush.msra.mxu0 %v707
  %748 = vmatpush.msra.mxu0 %v706
  %749 = vmatpush.msra.mxu0 %v705
  %750 = vmatpush.msra.mxu0 %v704
  %751 = vmatpush.msra.mxu0 %v703
  %752 = vmatpush.msra.mxu0 %v702
  %753 = vmatpush.msra.mxu0 %v701
  %754 = vmatpush.msra.mxu0 %v700
  %755 = vmatpush.msra.mxu0 %v699
  %756 = vmatpush.msra.mxu0 %v698
  %757 = vmatpush.msra.mxu0 %v697
  %758 = vmatpush.msra.mxu0 %v696
  %759 = vmatpush.msra.mxu0 %v695
  %760 = vmatpush.msra.mxu0 %v694
  %761 = vmatpush.msra.mxu0 %v693
  %762 = vmatpush.msra.mxu0 %v692
  %763 = vmatmul.f32.gmra.mxu0 %v106
  %v764 = vpop.f32.mrf.mxu0
  %v765 = vadd.f32 %v742, %v764
  %766 = vmatmul.f32.gmra.mxu0 %v108
  %v767 = vpop.f32.mrf.mxu0
  %v768 = vadd.f32 %v745, %v767
  %769 = vdwg.mxu0
  %v770 = vld [vmem:[%s10] sm:$0xff]
  %v771 = vld [vmem:[%s10 + $0x8] sm:$0xff]
  %v772 = vld [vmem:[%s10 + $0x10] sm:$0xff]
  %v773 = vld [vmem:[%s10 + $0x18] sm:$0xff]
  %v774 = vld [vmem:[%s10 + $0x20] sm:$0xff]
  %v775 = vld [vmem:[%s10 + $0x28] sm:$0xff]
  %v776 = vld [vmem:[%s10 + $0x30] sm:$0xff]
  %v777 = vld [vmem:[%s10 + $0x38] sm:$0xff]
  %vm778 = vcmask 523264
  %v780 = vsel %vm778, %v765, 0
  %v783 = vsel %vm778, %v768, 0
  %785 = vmatpush.msra.mxu0 0.0
  %786 = vmatpush.msra.mxu0 0.0
  %787 = vmatpush.msra.mxu0 0.0
  %788 = vmatpush.msra.mxu0 0.0
  %789 = vmatpush.msra.mxu0 0.0
  %790 = vmatpush.msra.mxu0 0.0
  %791 = vmatpush.msra.mxu0 0.0
  %792 = vmatpush.msra.mxu0 0.0
  %793 = vmatpush.msra.mxu0 %v777
  %794 = vmatpush.msra.mxu0 %v776
  %795 = vmatpush.msra.mxu0 %v775
  %796 = vmatpush.msra.mxu0 %v774
  %797 = vmatpush.msra.mxu0 %v773
  %798 = vmatpush.msra.mxu0 %v772
  %799 = vmatpush.msra.mxu0 %v771
  %800 = vmatpush.msra.mxu0 %v770
  %801 = vmatmul.f32.gmra.mxu0 %v780
  %v802 = vpop.f32.mrf.mxu0
  %v803 = vadd.f32 1e-08, %v802
  %804 = vmatmul.f32.gmra.mxu0 %v783
  %v805 = vpop.f32.mrf.mxu0
  %v806 = vadd.f32 1e-08, %v805
  %807 = vdwg.mxu0
  %v808 = vld [vmem:[%s11] sm:$0xff]
  %v809 = vld [vmem:[%s11 + $0x8] sm:$0xff]
  %v810 = vld [vmem:[%s11 + $0x10] sm:$0xff]
  %v811 = vld [vmem:[%s11 + $0x18] sm:$0xff]
  %v812 = vld [vmem:[%s11 + $0x20] sm:$0xff]
  %v813 = vld [vmem:[%s11 + $0x28] sm:$0xff]
  %v814 = vld [vmem:[%s11 + $0x30] sm:$0xff]
  %v815 = vld [vmem:[%s11 + $0x38] sm:$0xff]
  %v817 = vsel %vm459, %v808, 0
  %v820 = vsel %vm459, %v809, 0
  %822 = vmatpush.msra.mxu0 0.0
  %823 = vmatpush.msra.mxu0 0.0
  %824 = vmatpush.msra.mxu0 0.0
  %825 = vmatpush.msra.mxu0 0.0
  %826 = vmatpush.msra.mxu0 0.0
  %827 = vmatpush.msra.mxu0 0.0
  %828 = vmatpush.msra.mxu0 0.0
  %829 = vmatpush.msra.mxu0 0.0
  %830 = vmatpush.msra.mxu0 0.0
  %831 = vmatpush.msra.mxu0 0.0
  %832 = vmatpush.msra.mxu0 0.0
  %833 = vmatpush.msra.mxu0 0.0
  %834 = vmatpush.msra.mxu0 0.0
  %835 = vmatpush.msra.mxu0 0.0
  %836 = vmatpush.msra.mxu0 %v806
  %837 = vmatpush.msra.mxu0 %v803
  %838 = vmatmul.f32.gmra.mxu0 %v817
  %v839 = vpop.f32.mrf.mxu0
  %v840 = vadd.f32 0.0, %v839
  %841 = vmatmul.f32.gmra.mxu0 %v820
  %v842 = vpop.f32.mrf.mxu0
  %v843 = vadd.f32 0.0, %v842
  %844 = vdwg.mxu0
  %v846 = vsel %vm459, %v810, 0
  %v849 = vsel %vm459, %v811, 0
  %851 = vmatpush.msra.mxu0 0.0
  %852 = vmatpush.msra.mxu0 0.0
  %853 = vmatpush.msra.mxu0 0.0
  %854 = vmatpush.msra.mxu0 0.0
  %855 = vmatpush.msra.mxu0 0.0
  %856 = vmatpush.msra.mxu0 0.0
  %857 = vmatpush.msra.mxu0 0.0
  %858 = vmatpush.msra.mxu0 0.0
  %859 = vmatpush.msra.mxu0 0.0
  %860 = vmatpush.msra.mxu0 0.0
  %861 = vmatpush.msra.mxu0 0.0
  %862 = vmatpush.msra.mxu0 0.0
  %863 = vmatpush.msra.mxu0 0.0
  %864 = vmatpush.msra.mxu0 0.0
  %865 = vmatpush.msra.mxu0 %v806
  %866 = vmatpush.msra.mxu0 %v803
  %867 = vmatmul.f32.gmra.mxu0 %v846
  %v868 = vpop.f32.mrf.mxu0
  %v869 = vadd.f32 0.0, %v868
  %870 = vmatmul.f32.gmra.mxu0 %v849
  %v871 = vpop.f32.mrf.mxu0
  %v872 = vadd.f32 0.0, %v871
  %873 = vdwg.mxu0
  %876 = vrot.lane.b32.xlu0 %v869, 64
  %v877 = vpop.permute.xlu0 %876
  %878 = vrot.lane.b32.xlu0 %v872, 64
  %v879 = vpop.permute.xlu0 %878
  %v882 = vsel %vm778, %v840, %v877
  %v883 = vsel %vm778, %v843, %v879
  %v884 = vld [vmem:[%s12] sm:$0xff]
  %v885 = vld [vmem:[%s12 + $0x8] sm:$0xff]
  %v886 = vld [vmem:[%s12 + $0x10] sm:$0xff]
  %v887 = vld [vmem:[%s12 + $0x18] sm:$0xff]
  %v888 = vld [vmem:[%s12 + $0x20] sm:$0xff]
  %v889 = vld [vmem:[%s12 + $0x28] sm:$0xff]
  %v890 = vld [vmem:[%s12 + $0x30] sm:$0xff]
  %v891 = vld [vmem:[%s12 + $0x38] sm:$0xff]
  %v892 = vld [vmem:[%s12 + $0x40] sm:$0xff]
  %v893 = vld [vmem:[%s12 + $0x48] sm:$0xff]
  %v894 = vld [vmem:[%s12 + $0x50] sm:$0xff]
  %v895 = vld [vmem:[%s12 + $0x58] sm:$0xff]
  %v896 = vld [vmem:[%s12 + $0x60] sm:$0xff]
  %v897 = vld [vmem:[%s12 + $0x68] sm:$0xff]
  %v898 = vld [vmem:[%s12 + $0x70] sm:$0xff]
  %v899 = vld [vmem:[%s12 + $0x78] sm:$0xff]
  %vm900 = vcmp.lt.s32.totalorder %v319, 40
  %v901 = vsel %vm900, 2e-08, 1e-08
  %902 = vmatpush.msra.mxu0 %v899
  %903 = vmatpush.msra.mxu0 %v898
  %904 = vmatpush.msra.mxu0 %v897
  %905 = vmatpush.msra.mxu0 %v896
  %906 = vmatpush.msra.mxu0 %v895
  %907 = vmatpush.msra.mxu0 %v894
  %908 = vmatpush.msra.mxu0 %v893
  %909 = vmatpush.msra.mxu0 %v892
  %910 = vmatpush.msra.mxu0 %v891
  %911 = vmatpush.msra.mxu0 %v890
  %912 = vmatpush.msra.mxu0 %v889
  %913 = vmatpush.msra.mxu0 %v888
  %914 = vmatpush.msra.mxu0 %v887
  %915 = vmatpush.msra.mxu0 %v886
  %916 = vmatpush.msra.mxu0 %v885
  %917 = vmatpush.msra.mxu0 %v884
  %918 = vmatmul.f32.gmra.mxu0 %v882
  %v919 = vpop.f32.mrf.mxu0
  %v920 = vadd.f32 %v901, %v919
  %921 = vmatmul.f32.gmra.mxu0 %v883
  %v922 = vpop.f32.mrf.mxu0
  %v923 = vadd.f32 %v901, %v922
  %924 = vdwg.mxu0
  %v925 = vld [vmem:[%s13] sm:$0xff]
  %v926 = vld [vmem:[%s13 + $0x8] sm:$0xff]
  %v927 = vld [vmem:[%s13 + $0x10] sm:$0xff]
  %v928 = vld [vmem:[%s13 + $0x18] sm:$0xff]
  %v929 = vld [vmem:[%s13 + $0x20] sm:$0xff]
  %v930 = vld [vmem:[%s13 + $0x28] sm:$0xff]
  %v931 = vld [vmem:[%s13 + $0x30] sm:$0xff]
  %v932 = vld [vmem:[%s13 + $0x38] sm:$0xff]
  %v933 = vld [vmem:[%s13 + $0x40] sm:$0xff]
  %v934 = vld [vmem:[%s13 + $0x48] sm:$0xff]
  %vm935 = vcmask 654336
  %v937 = vsel %vm935, %v920, 0
  %v940 = vsel %vm935, %v923, 0
  %942 = vmatpush.msra.mxu0 0.0
  %943 = vmatpush.msra.mxu0 0.0
  %944 = vmatpush.msra.mxu0 0.0
  %945 = vmatpush.msra.mxu0 0.0
  %946 = vmatpush.msra.mxu0 0.0
  %947 = vmatpush.msra.mxu0 0.0
  %948 = vmatpush.msra.mxu0 %v934
  %949 = vmatpush.msra.mxu0 %v933
  %950 = vmatpush.msra.mxu0 %v932
  %951 = vmatpush.msra.mxu0 %v931
  %952 = vmatpush.msra.mxu0 %v930
  %953 = vmatpush.msra.mxu0 %v929
  %954 = vmatpush.msra.mxu0 %v928
  %955 = vmatpush.msra.mxu0 %v927
  %956 = vmatpush.msra.mxu0 %v926
  %957 = vmatpush.msra.mxu0 %v925
  %958 = vmatmul.f32.gmra.mxu0 %v937
  %v959 = vpop.f32.mrf.mxu0
  %v960 = vadd.f32 0.0, %v959
  %961 = vmatmul.f32.gmra.mxu0 %v940
  %v962 = vpop.f32.mrf.mxu0
  %v963 = vadd.f32 0.0, %v962
  %964 = vdwg.mxu0
  %v965 = vld [vmem:[%s14] sm:$0xff]
  %v966 = vld [vmem:[%s14 + $0x8] sm:$0xff]
  %v967 = vld [vmem:[%s14 + $0x10] sm:$0xff]
  %v968 = vld [vmem:[%s14 + $0x18] sm:$0xff]
  %v969 = vld [vmem:[%s14 + $0x20] sm:$0xff]
  %v970 = vld [vmem:[%s14 + $0x28] sm:$0xff]
  %v971 = vld [vmem:[%s14 + $0x30] sm:$0xff]
  %v972 = vld [vmem:[%s14 + $0x38] sm:$0xff]
  %v973 = vld [vmem:[%s14 + $0x40] sm:$0xff]
  %v974 = vld [vmem:[%s14 + $0x48] sm:$0xff]
  %975 = vmatpush.msra.mxu0 0.0
  %976 = vmatpush.msra.mxu0 0.0
  %977 = vmatpush.msra.mxu0 0.0
  %978 = vmatpush.msra.mxu0 0.0
  %979 = vmatpush.msra.mxu0 0.0
  %980 = vmatpush.msra.mxu0 0.0
  %981 = vmatpush.msra.mxu0 %v974
  %982 = vmatpush.msra.mxu0 %v973
  %983 = vmatpush.msra.mxu0 %v972
  %984 = vmatpush.msra.mxu0 %v971
  %985 = vmatpush.msra.mxu0 %v970
  %986 = vmatpush.msra.mxu0 %v969
  %987 = vmatpush.msra.mxu0 %v968
  %988 = vmatpush.msra.mxu0 %v967
  %989 = vmatpush.msra.mxu0 %v966
  %990 = vmatpush.msra.mxu0 %v965
  %991 = vmatmul.f32.gmra.mxu0 %v937
  %v992 = vpop.f32.mrf.mxu0
  %v993 = vadd.f32 0.0, %v992
  %994 = vmatmul.f32.gmra.mxu0 %v940
  %v995 = vpop.f32.mrf.mxu0
  %v996 = vadd.f32 0.0, %v995
  %997 = vdwg.mxu0
  %v999 = vsel %vm459, %v814, 0
  %v1002 = vsel %vm459, %v815, 0
  %1004 = vmatpush.msra.mxu0 0.0
  %1005 = vmatpush.msra.mxu0 0.0
  %1006 = vmatpush.msra.mxu0 0.0
  %1007 = vmatpush.msra.mxu0 0.0
  %1008 = vmatpush.msra.mxu0 0.0
  %1009 = vmatpush.msra.mxu0 0.0
  %1010 = vmatpush.msra.mxu0 0.0
  %1011 = vmatpush.msra.mxu0 0.0
  %1012 = vmatpush.msra.mxu0 0.0
  %1013 = vmatpush.msra.mxu0 0.0
  %1014 = vmatpush.msra.mxu0 0.0
  %1015 = vmatpush.msra.mxu0 0.0
  %1016 = vmatpush.msra.mxu0 0.0
  %1017 = vmatpush.msra.mxu0 0.0
  %1018 = vmatpush.msra.mxu0 %v996
  %1019 = vmatpush.msra.mxu0 %v993
  %1020 = vmatmul.f32.gmra.mxu0 %v999
  %v1021 = vpop.f32.mrf.mxu0
  %v1022 = vadd.f32 0.0, %v1021
  %1023 = vmatmul.f32.gmra.mxu0 %v1002
  %v1024 = vpop.f32.mrf.mxu0
  %v1025 = vadd.f32 0.0, %v1024
  %1026 = vdwg.mxu0
  %v1028 = vsel %vm459, %v812, 0
  %v1031 = vsel %vm459, %v813, 0
  %1033 = vmatpush.msra.mxu0 0.0
  %1034 = vmatpush.msra.mxu0 0.0
  %1035 = vmatpush.msra.mxu0 0.0
  %1036 = vmatpush.msra.mxu0 0.0
  %1037 = vmatpush.msra.mxu0 0.0
  %1038 = vmatpush.msra.mxu0 0.0
  %1039 = vmatpush.msra.mxu0 0.0
  %1040 = vmatpush.msra.mxu0 0.0
  %1041 = vmatpush.msra.mxu0 0.0
  %1042 = vmatpush.msra.mxu0 0.0
  %1043 = vmatpush.msra.mxu0 0.0
  %1044 = vmatpush.msra.mxu0 0.0
  %1045 = vmatpush.msra.mxu0 0.0
  %1046 = vmatpush.msra.mxu0 0.0
  %1047 = vmatpush.msra.mxu0 %v963
  %1048 = vmatpush.msra.mxu0 %v960
  %1049 = vmatmul.f32.gmra.mxu0 %v1028
  %v1050 = vpop.f32.mrf.mxu0
  %v1051 = vadd.f32 %v1022, %v1050
  %1052 = vmatmul.f32.gmra.mxu0 %v1031
  %v1053 = vpop.f32.mrf.mxu0
  %v1054 = vadd.f32 %v1025, %v1053
  %1055 = vdwg.mxu0
  %v1056 = vand.u32 2147483647, %v1051
  %v1057 = vand.u32 2147483647, %v1054
  %1060 = vrot.lane.b32.xlu0 %v1056, 64
  %v1061 = vpop.permute.xlu0 %1060
  %1062 = vrot.lane.b32.xlu0 %v1057, 64
  %v1063 = vpop.permute.xlu0 %1062
  %v1066 = vsel %vm778, %v1056, %v1061
  %v1067 = vsel %vm778, %v1057, %v1063
  %v1068 = vadd.f32 %v106, %v688
  %v1069 = vadd.f32 %v107, %v689
  %v1070 = vadd.f32 %v108, %v690
  %v1071 = vadd.f32 %v109, %v691
  %v1072 = vadd.f32 %v1068, %v1066
  %v1073 = vadd.f32 %v1069, %v1066
  %v1074 = vadd.f32 %v1070, %v1067
  %v1075 = vadd.f32 %v1071, %v1067
  %v1076 = vld [vmem:[%s15] sm:$0xff]
  %v1077 = vld [vmem:[%s15 + $0x8] sm:$0xff]
  %v1078 = vld [vmem:[%s15 + $0x10] sm:$0xff]
  %v1079 = vld [vmem:[%s15 + $0x18] sm:$0xff]
  %v1080 = vld [vmem:[%s15 + $0x20] sm:$0xff]
  %v1081 = vld [vmem:[%s15 + $0x28] sm:$0xff]
  %v1082 = vld [vmem:[%s15 + $0x30] sm:$0xff]
  %v1083 = vld [vmem:[%s15 + $0x38] sm:$0xff]
  %v1084 = vld [vmem:[%s15 + $0x40] sm:$0xff]
  %v1085 = vld [vmem:[%s15 + $0x48] sm:$0xff]
  %v1086 = vld [vmem:[%s15 + $0x50] sm:$0xff]
  %v1087 = vld [vmem:[%s15 + $0x58] sm:$0xff]
  %v1088 = vld [vmem:[%s15 + $0x60] sm:$0xff]
  %v1089 = vld [vmem:[%s15 + $0x68] sm:$0xff]
  %v1090 = vld [vmem:[%s15 + $0x70] sm:$0xff]
  %v1091 = vld [vmem:[%s15 + $0x78] sm:$0xff]
  %v1092 = vld [vmem:[%s15 + $0x80] sm:$0xff]
  %v1093 = vld [vmem:[%s15 + $0x88] sm:$0xff]
  %v1094 = vld [vmem:[%s15 + $0x90] sm:$0xff]
  %v1095 = vld [vmem:[%s15 + $0x98] sm:$0xff]
  %v1096 = vld [vmem:[%s15 + $0xa0] sm:$0xff]
  %v1097 = vld [vmem:[%s15 + $0xa8] sm:$0xff]
  %v1098 = vld [vmem:[%s15 + $0xb0] sm:$0xff]
  %v1099 = vld [vmem:[%s15 + $0xb8] sm:$0xff]
  %v1100 = vld [vmem:[%s15 + $0xc0] sm:$0xff]
  %v1101 = vld [vmem:[%s15 + $0xc8] sm:$0xff]
  %v1102 = vld [vmem:[%s15 + $0xd0] sm:$0xff]
  %v1103 = vld [vmem:[%s15 + $0xd8] sm:$0xff]
  %v1104 = vld [vmem:[%s15 + $0xe0] sm:$0xff]
  %v1105 = vld [vmem:[%s15 + $0xe8] sm:$0xff]
  %v1106 = vld [vmem:[%s15 + $0xf0] sm:$0xff]
  %v1107 = vld [vmem:[%s15 + $0xf8] sm:$0xff]
  %1108 = vmatpush.msra.mxu0 %v1106
  %1109 = vmatpush.msra.mxu0 %v1104
  %1110 = vmatpush.msra.mxu0 %v1102
  %1111 = vmatpush.msra.mxu0 %v1100
  %1112 = vmatpush.msra.mxu0 %v1098
  %1113 = vmatpush.msra.mxu0 %v1096
  %1114 = vmatpush.msra.mxu0 %v1094
  %1115 = vmatpush.msra.mxu0 %v1092
  %1116 = vmatpush.msra.mxu0 %v1090
  %1117 = vmatpush.msra.mxu0 %v1088
  %1118 = vmatpush.msra.mxu0 %v1086
  %1119 = vmatpush.msra.mxu0 %v1084
  %1120 = vmatpush.msra.mxu0 %v1082
  %1121 = vmatpush.msra.mxu0 %v1080
  %1122 = vmatpush.msra.mxu0 %v1078
  %1123 = vmatpush.msra.mxu0 %v1076
  %1124 = vmatmul.f32.gmra.mxu0 %v1072
  %v1125 = vpop.f32.mrf.mxu0
  %v1126 = vadd.f32 0.0, %v1125
  %1127 = vmatmul.f32.gmra.mxu0 %v1073
  %v1128 = vpop.f32.mrf.mxu0
  %v1129 = vadd.f32 0.0, %v1128
  %1130 = vmatmul.f32.gmra.mxu0 %v1074
  %v1131 = vpop.f32.mrf.mxu0
  %v1132 = vadd.f32 0.0, %v1131
  %1133 = vmatmul.f32.gmra.mxu0 %v1075
  %v1134 = vpop.f32.mrf.mxu0
  %v1135 = vadd.f32 0.0, %v1134
  %1136 = vdwg.mxu0
  %1137 = vmatpush.msra.mxu0 %v1107
  %1138 = vmatpush.msra.mxu0 %v1105
  %1139 = vmatpush.msra.mxu0 %v1103
  %1140 = vmatpush.msra.mxu0 %v1101
  %1141 = vmatpush.msra.mxu0 %v1099
  %1142 = vmatpush.msra.mxu0 %v1097
  %1143 = vmatpush.msra.mxu0 %v1095
  %1144 = vmatpush.msra.mxu0 %v1093
  %1145 = vmatpush.msra.mxu0 %v1091
  %1146 = vmatpush.msra.mxu0 %v1089
  %1147 = vmatpush.msra.mxu0 %v1087
  %1148 = vmatpush.msra.mxu0 %v1085
  %1149 = vmatpush.msra.mxu0 %v1083
  %1150 = vmatpush.msra.mxu0 %v1081
  %1151 = vmatpush.msra.mxu0 %v1079
  %1152 = vmatpush.msra.mxu0 %v1077
  %1153 = vmatmul.f32.gmra.mxu0 %v1072
  %v1154 = vpop.f32.mrf.mxu0
  %v1155 = vadd.f32 0.0, %v1154
  %1156 = vmatmul.f32.gmra.mxu0 %v1073
  %v1157 = vpop.f32.mrf.mxu0
  %v1158 = vadd.f32 0.0, %v1157
  %1159 = vmatmul.f32.gmra.mxu0 %v1074
  %v1160 = vpop.f32.mrf.mxu0
  %v1161 = vadd.f32 0.0, %v1160
  %1162 = vmatmul.f32.gmra.mxu0 %v1075
  %v1163 = vpop.f32.mrf.mxu0
  %v1164 = vadd.f32 0.0, %v1163
  %1165 = vdwg.mxu0
  %1166 = vst [vmem:[%s16] sm:$0xff] %v1126
  %1167 = vst [vmem:[%s16 + $0x8] sm:$0xff] %v1155
  %1168 = vst [vmem:[%s16 + $0x10] sm:$0xff] %v1129
  %1169 = vst [vmem:[%s16 + $0x18] sm:$0xff] %v1158
  %1170 = vst [vmem:[%s16 + $0x20] sm:$0xff] %v1132
  %1171 = vst [vmem:[%s16 + $0x28] sm:$0xff] %v1161
  %1172 = vst [vmem:[%s16 + $0x30] sm:$0xff] %v1135
  %1173 = vst [vmem:[%s16 + $0x38] sm:$0xff] %v1164
  // Predicated region
  $region66: #{spectral_transform_forward.1} parent=0 // pred_check
    _
  $region67: #{spectral_transform_forward.1} parent=0 // pred_check_branch
    %1175 = sbr.rel (0) target = $region69
  $region68: #{spectral_transform_forward.1} parent=0 // pred_region
    _
  $region69: #{spectral_transform_forward.1} parent=0 // pred_fallthru
    _
  // Predicated region
  $region70: #{spectral_transform_forward.1} parent=0 // pred_check
    _
  $region71: #{spectral_transform_forward.1} parent=0 // pred_check_branch
    %1177 = sbr.rel (0) target = $region73
  $region72: #{spectral_transform_forward.1} parent=0 // pred_region
    _
  $region73: #{spectral_transform_forward.1} parent=0 // pred_fallthru
    _

</llo_original>
